<compile_context>
chip_gen: v7x
topology: tpu7x:2x2x1
jax: 0.10.0
libtpu: 0.0.40
codegen_flags: <defaults>
</compile_context>

<pallas_src>
import jax
import jax.numpy as jnp
from jax import lax
from jax.experimental import pallas as pl
from jax.experimental.pallas import tpu as pltpu


def _round_up(n, m):
    return ((n + m - 1) // m) * m


# ----------------------------------------------------------------------------
# Pass 1: frame-wise MLP + attention projection, tiled over frames.
# ----------------------------------------------------------------------------
def _mlp_kernel(x_ref, w1_ref, b14_ref, w234_ref, wa1_ref, ba1_ref, wa2_ref,
                h_ref, a_ref):
    b = b14_ref[...]                                           # (4, H)
    h = jnp.maximum(
        jnp.dot(x_ref[...], w1_ref[...], preferred_element_type=jnp.float32)
        + b[0:1, :], 0.0)
    for i in range(3):                                         # layers 2..4
        h = jnp.maximum(
            jnp.dot(h, w234_ref[i], preferred_element_type=jnp.float32)
            + b[i + 1:i + 2, :], 0.0)
    a = jnp.tanh(
        jnp.dot(h, wa1_ref[...], preferred_element_type=jnp.float32)
        + ba1_ref[...])
    h_ref[...] = h
    a_ref[...] = jnp.dot(a, wa2_ref[...], preferred_element_type=jnp.float32)


# ----------------------------------------------------------------------------
# Pass 2: per-utterance epilogue, UB utterances per grid step.
# ----------------------------------------------------------------------------
def _make_epilogue_kernel(WIN, UB, D, H, r, O, Opad):
    def kernel(offs_ref, lens_ref, x_ref, h_ref, a_ref, wp_ref, wms_ref,
               out_ref):
        g = pl.program_id(0)
        wp = wp_ref[...]                                       # (r, H, Opad)
        wms = wms_ref[...]                                     # (2D+1, Opad)
        wm = wms[0:D, :]
        ws = wms[D:2 * D, :]
        bout = wms[2 * D:2 * D + 1, :]
        lane1 = lax.broadcasted_iota(jnp.int32, (1, Opad), 1)
        dn = (((0,), (0,)), ((), ()))                          # contract frames

        for i in range(UB):                                    # static unroll
            u = g * UB + i
            pos = offs_ref[u]
            l = lens_ref[u]
            start = pl.multiple_of((pos // 8) * 8, 8)
            xw = x_ref[pl.ds(start, WIN), :]                   # (WIN, D)
            hw = h_ref[pl.ds(start, WIN), :]                   # (WIN, H)
            Aw = a_ref[pl.ds(start, WIN), :]                   # (WIN, r)

            frame = start + lax.broadcasted_iota(jnp.int32, (WIN, 1), 0)
            in_seg = (frame >= pos) & (frame < pos + l)
            m = in_seg.astype(jnp.float32)

            # Column softmax over this utterance's frames (torch dim=0).
            A_msk = jnp.where(in_seg, Aw, -1e30)
            col_max = jnp.max(A_msk, axis=0, keepdims=True)
            e = jnp.exp(A_msk - col_max) * m
            denom = jnp.sum(e, axis=0, keepdims=True)          # (1, r)
            inv = pl.reciprocal(denom, approx=True)            # EUP slot
            inv = inv * (2.0 - denom * inv)                    # 1 Newton step
            A_sm = e * inv                                     # (WIN, r)

            # Penalty: (sqrt(A^T) sqrt(A^T)^T - 1)^2 summed -> scalar.
            sq = jnp.sqrt(A_sm)
            G = lax.dot_general(sq, sq, dn, preferred_element_type=jnp.float32)
            pen = jnp.sum((G - 1.0) ** 2)

            # Mean / unbiased std of x over the segment (l==1 -> inf, as torch).
            lf = l.astype(jnp.float32)
            inv_l = 1.0 / lf
            inv_lm1 = 1.0 / (lf - 1.0)
            mean = jnp.sum(xw * m, axis=0, keepdims=True) * inv_l
            var = jnp.sum(((xw - mean) * m) ** 2, axis=0, keepdims=True) * inv_lm1
            std = jnp.sqrt(var)

            # r-head pooling + single batched head contraction.
            pooled = lax.dot_general(A_sm, hw, dn,
                                     preferred_element_type=jnp.float32)  # (r,H)
            heads = jnp.einsum('rmh,rho->rmo', pooled[:, None, :], wp,
                               preferred_element_type=jnp.float32)        # (r,1,Opad)
            logits = (jnp.sum(heads, axis=0)
                      + jnp.dot(mean, wm, preferred_element_type=jnp.float32)
                      + jnp.dot(std, ws, preferred_element_type=jnp.float32)
                      + bout)                                             # (1, Opad)

            # Stash raw logits; penalty rides in spare lane O.
            out_ref[i:i + 1, :] = jnp.where(lane1 == O, pen, logits)

        # Batched log-softmax over the real class lanes for all UB rows.
        L = out_ref[...]
        lane = lax.broadcasted_iota(jnp.int32, (UB, Opad), 1)
        Lm = jnp.where(lane < O, L, -1e30)
        mx = jnp.max(Lm, axis=1, keepdims=True)
        z = Lm - mx
        lse = jnp.log(jnp.sum(jnp.exp(z), axis=1, keepdims=True))
        out_ref[...] = jnp.where(lane < O, z - lse, L)

    return kernel


# ----------------------------------------------------------------------------
# Wrapper
# ----------------------------------------------------------------------------
def net_forward(x, offsets, lengths, p, *, max_len, utt_block=8,
                frame_tile=128, out_lanes=128):
    T, D = x.shape
    H = p['W1'].shape[1]
    da = p['Wa1'].shape[1]
    r = p['Wa2'].shape[1]
    O = p['Wout'].shape[1]
    B = offsets.shape[0]

    Opad = max(out_lanes, _round_up(O + 1, 128))
    UB = utt_block
    WIN = _round_up(max_len, 8) + 8
    TF = frame_tile
    T_pad = _round_up(T + WIN, TF)
    NT = T_pad // TF
    x_pad = jnp.pad(x, ((0, T_pad - T), (0, 0)))   # zero rows: finite & masked

    # ---- pass 1: frame-wise MLP + attention projection ---------------------
    W234 = jnp.stack([p['W2'], p['W3'], p['W4']])                        # (3,H,H)
    B14 = jnp.concatenate([p['b1'], p['b2'], p['b3'], p['b4']], axis=0)  # (4,H)

    def cfull(shape):
        return pl.BlockSpec(shape, lambda t, _n=len(shape): (0,) * _n)

    h_all, a_all = pl.pallas_call(
        _mlp_kernel,
        out_shape=(jax.ShapeDtypeStruct((T_pad, H), jnp.float32),
                   jax.ShapeDtypeStruct((T_pad, r), jnp.float32)),
        grid_spec=pltpu.PrefetchScalarGridSpec(
            num_scalar_prefetch=0,
            grid=(NT,),
            in_specs=[
                pl.BlockSpec((TF, D), lambda t: (t, 0)),
                cfull((D, H)), cfull((4, H)), cfull((3, H, H)),
                cfull((H, da)), cfull((1, da)), cfull((da, r)),
            ],
            out_specs=(pl.BlockSpec((TF, H), lambda t: (t, 0)),
                       pl.BlockSpec((TF, r), lambda t: (t, 0))),
        ),
        compiler_params=pltpu.CompilerParams(
            dimension_semantics=("parallel",),
            vmem_limit_bytes=32 * 1024 * 1024),
    )(x_pad, p['W1'], B14, W234, p['Wa1'], p['ba1'], p['Wa2'])

    # ---- pass 2: per-utterance epilogue -------------------------------------
    rH = r * H
    Wout = p['Wout']                                        # (r*H + 2D, O)
    Wp = jnp.zeros((r, H, Opad), jnp.float32).at[:, :, :O].set(
        Wout[:rH].reshape(r, H, O))
    Wms = jnp.zeros((2 * D + 1, Opad), jnp.float32)
    Wms = Wms.at[:D, :O].set(Wout[rH:rH + D])               # mean block
    Wms = Wms.at[D:2 * D, :O].set(Wout[rH + D:])            # std block
    Wms = Wms.at[2 * D:, :O].set(p['bout'])                 # bias row

    B_pad = _round_up(B, UB)
    offs_p = jnp.concatenate(
        [offsets.astype(jnp.int32), jnp.zeros((B_pad - B,), jnp.int32)])
    lens_p = jnp.concatenate(
        [lengths.astype(jnp.int32), jnp.full((B_pad - B,), 2, jnp.int32)])

    def efull(shape):
        return pl.BlockSpec(shape, lambda g, o, l, _n=len(shape): (0,) * _n)

    kernel = _make_epilogue_kernel(WIN, UB, D, H, r, O, Opad)
    out = pl.pallas_call(
        kernel,
        out_shape=jax.ShapeDtypeStruct((B_pad, Opad), jnp.float32),
        grid_spec=pltpu.PrefetchScalarGridSpec(
            num_scalar_prefetch=2,
            grid=(B_pad // UB,),
            in_specs=[
                efull((T_pad, D)),          # x (resident, DMA'd once)
                efull((T_pad, H)),          # h
                efull((T_pad, r)),          # A
                efull((r, H, Opad)),        # per-head output weights
                efull((2 * D + 1, Opad)),   # [Wm; Ws; bout]
            ],
            out_specs=pl.BlockSpec((UB, Opad), lambda g, o, l: (g, 0)),
        ),
        compiler_params=pltpu.CompilerParams(
            dimension_semantics=("parallel",),
            vmem_limit_bytes=32 * 1024 * 1024),
    )(offs_p, lens_p, x_pad, h_all, a_all, Wp, Wms)

    logp = out[:B, :O]
    penalty = jnp.sum(out[:B, O])
    return logp, penalty


# ----------------------------------------------------------------------------
# Deterministic parameter construction (eval-mode BatchNorm folded into Linear)
# ----------------------------------------------------------------------------
def init_params(key, D, H, O, da, r):
    ks = jax.random.split(key, 12)

    def lin(k, fi, fo):
        kw, kb = jax.random.split(k)
        W = jax.random.normal(kw, (fi, fo), jnp.float32) / jnp.sqrt(float(fi))
        b = 0.1 * jax.random.normal(kb, (fo,), jnp.float32)
        return W, b

    def bn(k, n):
        k1, k2, k3, k4 = jax.random.split(k, 4)
        gamma = 1.0 + 0.1 * jax.random.normal(k1, (n,), jnp.float32)
        beta = 0.1 * jax.random.normal(k2, (n,), jnp.float32)
        mu = 0.1 * jax.random.normal(k3, (n,), jnp.float32)
        var = 0.5 + jax.random.uniform(k4, (n,), jnp.float32)
        return gamma, beta, mu, var

    def fold(W, b, gamma, beta, mu, var, eps=1e-5):
        s = gamma / jnp.sqrt(var + eps)
        return W * s[None, :], (b - mu) * s + beta

    p = {}
    W, b = lin(ks[0], D, H); p['W1'], p['b1'] = fold(W, b, *bn(ks[1], H))
    W, b = lin(ks[2], H, H); p['W2'], p['b2'] = fold(W, b, *bn(ks[3], H))
    W, b = lin(ks[4], H, H); p['W3'], p['b3'] = fold(W, b, *bn(ks[5], H))
    W, b = lin(ks[6], H, H); p['W4'], p['b4'] = fold(W, b, *bn(ks[7], H))
    W, b = lin(ks[8], H, da); p['Wa1'], p['ba1'] = fold(W, b, *bn(ks[9], da))
    p['Wa2'] = jax.random.normal(ks[10], (da, r), jnp.float32) / jnp.sqrt(float(da))
    p['Wout'], p['bout'] = lin(ks[11], r * H + 2 * D, O)
    for k in ('b1', 'b2', 'b3', 'b4', 'ba1', 'bout'):
        p[k] = p[k].reshape(1, -1)
    return p


# Pure-JAX reference (mirrors the PyTorch forward in eval mode)
def reference(x, lengths_py, p):
    h = x
    for i in (1, 2, 3, 4):
        h = jnp.maximum(h @ p[f'W{i}'] + p[f'b{i}'], 0.0)
    a = jnp.tanh(h @ p['Wa1'] + p['ba1'])
    A = a @ p['Wa2']
    pos, rows, pens = 0, [], []
    for l in lengths_py:
        Asm = jax.nn.softmax(A[pos:pos + l], axis=0)
        AsmT = Asm.T
        sq = jnp.sqrt(AsmT)
        pens.append((sq @ sq.T - 1.0) ** 2)
        xs = x[pos:pos + l]
        mean = jnp.mean(xs, axis=0)
        std = jnp.std(xs, axis=0, ddof=1)
        pooled = (AsmT @ h[pos:pos + l]).reshape(-1)
        rows.append(jnp.concatenate([pooled, mean, std]))
        pos += l
    feats = jnp.stack(rows)
    logits = feats @ p['Wout'] + p['bout']
    return jax.nn.log_softmax(logits, axis=1), jnp.sum(jnp.stack(pens))


if __name__ == "__main__":
    D, H, O, da, r = 16, 32, 8, 8, 4        # input_dim, hidden_dim, output_dim, da, r
    lengths_py = [7, 9]                      # frames per utterance
    T = sum(lengths_py)
    B = len(lengths_py)

    key = jax.random.PRNGKey(0)
    kx, kp = jax.random.split(key)
    x = jax.random.normal(kx, (T, D), jnp.float32)
    params = init_params(kp, D, H, O, da, r)

    offs = [0]
    for l in lengths_py[:-1]:
        offs.append(offs[-1] + l)
    offsets = jnp.array(offs, dtype=jnp.int32)
    lengths = jnp.array(lengths_py, dtype=jnp.int32)

    out, penalty = net_forward(x, offsets, lengths, params, max_len=max(lengths_py))
    out = jax.block_until_ready(out)
    penalty = jax.block_until_ready(penalty)

    ref_out, ref_pen = reference(x, lengths_py, params)
    assert out.shape == (B, O) and penalty.shape == ()
    assert jnp.allclose(out, ref_out, atol=3e-4, rtol=3e-4)
    assert jnp.allclose(penalty, ref_pen, atol=3e-4, rtol=3e-4)
    print("KERNEL_OK")
</pallas_src>

<mosaic_0001>
module attributes {stable_mosaic.version = 11 : i64} {
  func.func @_mlp_kernel(%arg0: i32, %arg1: memref<128x16xf32, #tpu.memory_space<vmem>>, %arg2: memref<16x32xf32, #tpu.memory_space<vmem>>, %arg3: memref<4x32xf32, #tpu.memory_space<vmem>>, %arg4: memref<3x32x32xf32, #tpu.memory_space<vmem>>, %arg5: memref<32x8xf32, #tpu.memory_space<vmem>>, %arg6: memref<1x8xf32, #tpu.memory_space<vmem>>, %arg7: memref<8x4xf32, #tpu.memory_space<vmem>>, %arg8: memref<128x32xf32, #tpu.memory_space<vmem>>, %arg9: memref<128x4xf32, #tpu.memory_space<vmem>>) attributes {dimension_semantics = [#tpu.dimension_semantics<parallel>], iteration_bounds = array<i64: 1>, scalar_prefetch = 0 : i64, scratch_operands = 0 : i64, tpu.core_type = #tpu.core_type<tc>, window_params = [{transform_indices = @transform_0, window_bounds = array<i64: 128, 16>}, {pipeline_mode = #tpu.pipeline_mode<synchronous>, transform_indices = @transform_1, window_bounds = array<i64: 16, 32>}, {pipeline_mode = #tpu.pipeline_mode<synchronous>, transform_indices = @transform_2, window_bounds = array<i64: 4, 32>}, {pipeline_mode = #tpu.pipeline_mode<synchronous>, transform_indices = @transform_3, window_bounds = array<i64: 3, 32, 32>}, {pipeline_mode = #tpu.pipeline_mode<synchronous>, transform_indices = @transform_4, window_bounds = array<i64: 32, 8>}, {pipeline_mode = #tpu.pipeline_mode<synchronous>, transform_indices = @transform_5, window_bounds = array<i64: 1, 8>}, {pipeline_mode = #tpu.pipeline_mode<synchronous>, transform_indices = @transform_6, window_bounds = array<i64: 8, 4>}, {transform_indices = @transform_7, window_bounds = array<i64: 128, 32>}, {transform_indices = @transform_8, window_bounds = array<i64: 128, 4>}]} {
    %c0 = arith.constant 0 : index
    %c0_0 = arith.constant 0 : index
    %0 = vector.load %arg3[%c0, %c0_0] : memref<4x32xf32, #tpu.memory_space<vmem>>, vector<4x32xf32>
    %c0_1 = arith.constant 0 : index
    %c0_2 = arith.constant 0 : index
    %1 = vector.load %arg1[%c0_1, %c0_2] : memref<128x16xf32, #tpu.memory_space<vmem>>, vector<128x16xf32>
    %c0_3 = arith.constant 0 : index
    %c0_4 = arith.constant 0 : index
    %2 = vector.load %arg2[%c0_3, %c0_4] : memref<16x32xf32, #tpu.memory_space<vmem>>, vector<16x32xf32>
    %cst = arith.constant dense<0.000000e+00> : vector<128x32xf32>
    %3 = tpu.matmul %1, %2, %cst {dimension_numbers = #tpu.dot_dimension_numbers<[1], [0], [0], [1], [0, 0, 1, 1], [], []>} : vector<128x16xf32>, vector<16x32xf32>, vector<128x32xf32> -> vector<128x32xf32>
    %4 = vector.extract_strided_slice %0 {offsets = [0, 0], sizes = [1, 32], strides = [1, 1]} : vector<4x32xf32> to vector<1x32xf32>
    %5 = vector.broadcast %4 : vector<1x32xf32> to vector<128x32xf32>
    %6 = arith.addf %3, %5 : vector<128x32xf32>
    %cst_5 = arith.constant 0.000000e+00 : f32
    %7 = vector.broadcast %cst_5 : f32 to vector<128x32xf32>
    %8 = arith.maximumf %6, %7 : vector<128x32xf32>
    %c0_6 = arith.constant 0 : index
    %c0_7 = arith.constant 0 : index
    %c0_8 = arith.constant 0 : index
    %9 = vector.load %arg4[%c0_6, %c0_7, %c0_8] : memref<3x32x32xf32, #tpu.memory_space<vmem>>, vector<1x32x32xf32>
    %10 = vector.shape_cast %9 : vector<1x32x32xf32> to vector<32x32xf32>
    %cst_9 = arith.constant dense<0.000000e+00> : vector<128x32xf32>
    %11 = tpu.matmul %8, %10, %cst_9 {dimension_numbers = #tpu.dot_dimension_numbers<[1], [0], [0], [1], [0, 0, 1, 1], [], []>} : vector<128x32xf32>, vector<32x32xf32>, vector<128x32xf32> -> vector<128x32xf32>
    %12 = vector.extract_strided_slice %0 {offsets = [1, 0], sizes = [1, 32], strides = [1, 1]} : vector<4x32xf32> to vector<1x32xf32>
    %13 = vector.broadcast %12 : vector<1x32xf32> to vector<128x32xf32>
    %14 = arith.addf %11, %13 : vector<128x32xf32>
    %cst_10 = arith.constant 0.000000e+00 : f32
    %15 = vector.broadcast %cst_10 : f32 to vector<128x32xf32>
    %16 = arith.maximumf %14, %15 : vector<128x32xf32>
    %c1 = arith.constant 1 : index
    %c0_11 = arith.constant 0 : index
    %c0_12 = arith.constant 0 : index
    %17 = vector.load %arg4[%c1, %c0_11, %c0_12] : memref<3x32x32xf32, #tpu.memory_space<vmem>>, vector<1x32x32xf32>
    %18 = vector.shape_cast %17 : vector<1x32x32xf32> to vector<32x32xf32>
    %cst_13 = arith.constant dense<0.000000e+00> : vector<128x32xf32>
    %19 = tpu.matmul %16, %18, %cst_13 {dimension_numbers = #tpu.dot_dimension_numbers<[1], [0], [0], [1], [0, 0, 1, 1], [], []>} : vector<128x32xf32>, vector<32x32xf32>, vector<128x32xf32> -> vector<128x32xf32>
    %20 = vector.extract_strided_slice %0 {offsets = [2, 0], sizes = [1, 32], strides = [1, 1]} : vector<4x32xf32> to vector<1x32xf32>
    %21 = vector.broadcast %20 : vector<1x32xf32> to vector<128x32xf32>
    %22 = arith.addf %19, %21 : vector<128x32xf32>
    %cst_14 = arith.constant 0.000000e+00 : f32
    %23 = vector.broadcast %cst_14 : f32 to vector<128x32xf32>
    %24 = arith.maximumf %22, %23 : vector<128x32xf32>
    %c2 = arith.constant 2 : index
    %c0_15 = arith.constant 0 : index
    %c0_16 = arith.constant 0 : index
    %25 = vector.load %arg4[%c2, %c0_15, %c0_16] : memref<3x32x32xf32, #tpu.memory_space<vmem>>, vector<1x32x32xf32>
    %26 = vector.shape_cast %25 : vector<1x32x32xf32> to vector<32x32xf32>
    %cst_17 = arith.constant dense<0.000000e+00> : vector<128x32xf32>
    %27 = tpu.matmul %24, %26, %cst_17 {dimension_numbers = #tpu.dot_dimension_numbers<[1], [0], [0], [1], [0, 0, 1, 1], [], []>} : vector<128x32xf32>, vector<32x32xf32>, vector<128x32xf32> -> vector<128x32xf32>
    %28 = vector.extract_strided_slice %0 {offsets = [3, 0], sizes = [1, 32], strides = [1, 1]} : vector<4x32xf32> to vector<1x32xf32>
    %29 = vector.broadcast %28 : vector<1x32xf32> to vector<128x32xf32>
    %30 = arith.addf %27, %29 : vector<128x32xf32>
    %cst_18 = arith.constant 0.000000e+00 : f32
    %31 = vector.broadcast %cst_18 : f32 to vector<128x32xf32>
    %32 = arith.maximumf %30, %31 : vector<128x32xf32>
    %c0_19 = arith.constant 0 : index
    %c0_20 = arith.constant 0 : index
    %33 = vector.load %arg5[%c0_19, %c0_20] : memref<32x8xf32, #tpu.memory_space<vmem>>, vector<32x8xf32>
    %cst_21 = arith.constant dense<0.000000e+00> : vector<128x8xf32>
    %34 = tpu.matmul %32, %33, %cst_21 {dimension_numbers = #tpu.dot_dimension_numbers<[1], [0], [0], [1], [0, 0, 1, 1], [], []>} : vector<128x32xf32>, vector<32x8xf32>, vector<128x8xf32> -> vector<128x8xf32>
    %c0_22 = arith.constant 0 : index
    %c0_23 = arith.constant 0 : index
    %35 = vector.load %arg6[%c0_22, %c0_23] : memref<1x8xf32, #tpu.memory_space<vmem>>, vector<1x8xf32>
    %36 = vector.broadcast %35 : vector<1x8xf32> to vector<128x8xf32>
    %37 = arith.addf %34, %36 : vector<128x8xf32>
    %38 = math.tanh %37 : vector<128x8xf32>
    %c0_24 = arith.constant 0 : index
    %c0_25 = arith.constant 0 : index
    %39 = vector.load %arg8[%c0_24, %c0_25] : memref<128x32xf32, #tpu.memory_space<vmem>>, vector<128x32xf32>
    tpu.vector_store %arg8[%c0_24, %c0_25], %32 {strides = array<i32>} : memref<128x32xf32, #tpu.memory_space<vmem>>, vector<128x32xf32>,
    %c0_26 = arith.constant 0 : index
    %c0_27 = arith.constant 0 : index
    %40 = vector.load %arg7[%c0_26, %c0_27] : memref<8x4xf32, #tpu.memory_space<vmem>>, vector<8x4xf32>
    %cst_28 = arith.constant dense<0.000000e+00> : vector<128x4xf32>
    %41 = tpu.matmul %38, %40, %cst_28 {dimension_numbers = #tpu.dot_dimension_numbers<[1], [0], [0], [1], [0, 0, 1, 1], [], []>} : vector<128x8xf32>, vector<8x4xf32>, vector<128x4xf32> -> vector<128x4xf32>
    %c0_29 = arith.constant 0 : index
    %c0_30 = arith.constant 0 : index
    %42 = vector.load %arg9[%c0_29, %c0_30] : memref<128x4xf32, #tpu.memory_space<vmem>>, vector<128x4xf32>
    tpu.vector_store %arg9[%c0_29, %c0_30], %41 {strides = array<i32>} : memref<128x4xf32, #tpu.memory_space<vmem>>, vector<128x4xf32>,
    return
  }
  func.func @transform_0(%arg0: i32) -> (i32, i32) {
    %c0_i32 = arith.constant 0 : i32
    %c0_i32_0 = arith.constant 0 : i32
    return %arg0, %c0_i32 : i32, i32
  }
  func.func @transform_1(%arg0: i32) -> (i32, i32) {
    %c0_i32 = arith.constant 0 : i32
    %c0_i32_0 = arith.constant 0 : i32
    %c0_i32_1 = arith.constant 0 : i32
    return %c0_i32, %c0_i32_0 : i32, i32
  }
  func.func @transform_2(%arg0: i32) -> (i32, i32) {
    %c0_i32 = arith.constant 0 : i32
    %c0_i32_0 = arith.constant 0 : i32
    %c0_i32_1 = arith.constant 0 : i32
    return %c0_i32, %c0_i32_0 : i32, i32
  }
  func.func @transform_3(%arg0: i32) -> (i32, i32, i32) {
    %c0_i32 = arith.constant 0 : i32
    %c0_i32_0 = arith.constant 0 : i32
    %c0_i32_1 = arith.constant 0 : i32
    %c0_i32_2 = arith.constant 0 : i32
    return %c0_i32, %c0_i32_0, %c0_i32_1 : i32, i32, i32
  }
  func.func @transform_4(%arg0: i32) -> (i32, i32) {
    %c0_i32 = arith.constant 0 : i32
    %c0_i32_0 = arith.constant 0 : i32
    %c0_i32_1 = arith.constant 0 : i32
    return %c0_i32, %c0_i32_0 : i32, i32
  }
  func.func @transform_5(%arg0: i32) -> (i32, i32) {
    %c0_i32 = arith.constant 0 : i32
    %c0_i32_0 = arith.constant 0 : i32
    %c0_i32_1 = arith.constant 0 : i32
    return %c0_i32, %c0_i32_0 : i32, i32
  }
  func.func @transform_6(%arg0: i32) -> (i32, i32) {
    %c0_i32 = arith.constant 0 : i32
    %c0_i32_0 = arith.constant 0 : i32
    %c0_i32_1 = arith.constant 0 : i32
    return %c0_i32, %c0_i32_0 : i32, i32
  }
  func.func @transform_7(%arg0: i32) -> (i32, i32) {
    %c0_i32 = arith.constant 0 : i32
    %c0_i32_0 = arith.constant 0 : i32
    return %arg0, %c0_i32 : i32, i32
  }
  func.func @transform_8(%arg0: i32) -> (i32, i32) {
    %c0_i32 = arith.constant 0 : i32
    %c0_i32_0 = arith.constant 0 : i32
    return %arg0, %c0_i32 : i32, i32
  }
}

</mosaic_0001>

<llo_original>
// kernel: tpu_custom_call.1
$region0: #{tpu_custom_call.1}
  #allocation0 [shape = 'u32[]', space=smem, size = 0x4, offset = 0x4, fixed_abs, tag = 'smem constant byte address 0x4 - core index']
  #allocation1 [shape = 'u32[144,128]{1,0:T(1,128)}', space=vmem, size = 0x12000, scoped, tag = 'internal scratch']
  %s0 = inlined_call_operand.vmem [shape: f32[128,16], index: 0, kind: input, shape index: {}]
  %s1 = inlined_call_operand.vmem [shape: f32[16,32], index: 1, kind: input, shape index: {}]
  %s2 = inlined_call_operand.vmem [shape: f32[4,32], index: 2, kind: input, shape index: {}]
  %s3 = inlined_call_operand.vmem [shape: f32[3,32,32], index: 3, kind: input, shape index: {}]
  %s4 = inlined_call_operand.vmem [shape: f32[32,8], index: 4, kind: input, shape index: {}]
  %s5 = inlined_call_operand.vmem [shape: f32[1,8], index: 5, kind: input, shape index: {}]
  %s6 = inlined_call_operand.vmem [shape: f32[8,4], index: 6, kind: input, shape index: {}]
  %s7 = inlined_call_operand.vmem [shape: f32[128,32], index: 7, kind: output, shape index: {0}]
  %s8 = inlined_call_operand.vmem [shape: f32[128,4], index: 8, kind: output, shape index: {1}]
  %9 = xla_tuple %s7, %s8
  %s10 = sld [smem:[#allocation0]]
  $region46: #{tpu_custom_call.1} parent=0
    _
  %s12 = ssub.s32 1, %s10
  %s13 = scalar_select 0, %s12, %s10
  // Predicated region
  $region2: #{tpu_custom_call.1} parent=0 // pred_check
    _
  $region3: #{tpu_custom_call.1} parent=0 // pred_check_branch
    %15 = sbr.rel (0) target = $region5
  $region4: #{tpu_custom_call.1} parent=0 // pred_region
    _
  $region5: #{tpu_custom_call.1} parent=0 // pred_fallthru
    _
  // Predicated region
  $region6: #{tpu_custom_call.1} parent=0 // pred_check
    _
  $region7: #{tpu_custom_call.1} parent=0 // pred_check_branch
    %17 = sbr.rel (0) target = $region9
  $region8: #{tpu_custom_call.1} parent=0 // pred_region
    _
  $region9: #{tpu_custom_call.1} parent=0 // pred_fallthru
    _
  // Predicated region
  $region10: #{tpu_custom_call.1} parent=0 // pred_check
    _
  $region11: #{tpu_custom_call.1} parent=0 // pred_check_branch
    %19 = sbr.rel (0) target = $region13
  $region12: #{tpu_custom_call.1} parent=0 // pred_region
    _
  $region13: #{tpu_custom_call.1} parent=0 // pred_fallthru
    _
  // Predicated region
  $region14: #{tpu_custom_call.1} parent=0 // pred_check
    _
  $region15: #{tpu_custom_call.1} parent=0 // pred_check_branch
    %21 = sbr.rel (0) target = $region17
  $region16: #{tpu_custom_call.1} parent=0 // pred_region
    _
  $region17: #{tpu_custom_call.1} parent=0 // pred_fallthru
    _
  // Predicated region
  $region18: #{tpu_custom_call.1} parent=0 // pred_check
    _
  $region19: #{tpu_custom_call.1} parent=0 // pred_check_branch
    %23 = sbr.rel (0) target = $region21
  $region20: #{tpu_custom_call.1} parent=0 // pred_region
    _
  $region21: #{tpu_custom_call.1} parent=0 // pred_fallthru
    _
  // Predicated region
  $region22: #{tpu_custom_call.1} parent=0 // pred_check
    _
  $region23: #{tpu_custom_call.1} parent=0 // pred_check_branch
    %25 = sbr.rel (0) target = $region25
  $region24: #{tpu_custom_call.1} parent=0 // pred_region
    _
  $region25: #{tpu_custom_call.1} parent=0 // pred_fallthru
    _
  // Predicated region
  $region26: #{tpu_custom_call.1} parent=0 // pred_check
    _
  $region27: #{tpu_custom_call.1} parent=0 // pred_check_branch
    %27 = sbr.rel (0) target = $region29
  $region28: #{tpu_custom_call.1} parent=0 // pred_region
    _
  $region29: #{tpu_custom_call.1} parent=0 // pred_fallthru
    _
  %v28 = vld [vmem:[%s2] sm:$0xf]
  %v29 = vld [vmem:[%s0] sm:$0xff]
  %v30 = vld [vmem:[%s0 + $0x8] sm:$0xff]
  %v31 = vld [vmem:[%s0 + $0x10] sm:$0xff]
  %v32 = vld [vmem:[%s0 + $0x18] sm:$0xff]
  %v33 = vld [vmem:[%s0 + $0x20] sm:$0xff]
  %v34 = vld [vmem:[%s0 + $0x28] sm:$0xff]
  %v35 = vld [vmem:[%s0 + $0x30] sm:$0xff]
  %v36 = vld [vmem:[%s0 + $0x38] sm:$0xff]
  %v37 = vld [vmem:[%s0 + $0x40] sm:$0xff]
  %v38 = vld [vmem:[%s0 + $0x48] sm:$0xff]
  %v39 = vld [vmem:[%s0 + $0x50] sm:$0xff]
  %v40 = vld [vmem:[%s0 + $0x58] sm:$0xff]
  %v41 = vld [vmem:[%s0 + $0x60] sm:$0xff]
  %v42 = vld [vmem:[%s0 + $0x68] sm:$0xff]
  %v43 = vld [vmem:[%s0 + $0x70] sm:$0xff]
  %v44 = vld [vmem:[%s0 + $0x78] sm:$0xff]
  %v45 = vld [vmem:[%s1] sm:$0xff]
  %v46 = vld [vmem:[%s1 + $0x8] sm:$0xff]
  %v47 = vlaneseq
  %v48 = vshrl.u32 %v47, 7
  %v49 = vsub.s32 0, %v48
  %v50 = vrot.slane %v28, %v49
  %vm51 = vcmask 130048
  %v53 = vsel %vm51, %v29, 0
  %v56 = vsel %vm51, %v30, 0
  %v59 = vsel %vm51, %v31, 0
  %v62 = vsel %vm51, %v32, 0
  %v65 = vsel %vm51, %v33, 0
  %v68 = vsel %vm51, %v34, 0
  %v71 = vsel %vm51, %v35, 0
  %v74 = vsel %vm51, %v36, 0
  %v77 = vsel %vm51, %v37, 0
  %v80 = vsel %vm51, %v38, 0
  %v83 = vsel %vm51, %v39, 0
  %v86 = vsel %vm51, %v40, 0
  %v89 = vsel %vm51, %v41, 0
  %v92 = vsel %vm51, %v42, 0
  %v95 = vsel %vm51, %v43, 0
  %v98 = vsel %vm51, %v44, 0
  %100 = vmatprep.subr.mxu0 0.0
  %101 = vmatpush1.msra.mxu0 %v45
  %102 = vmatprep.subr.mxu0 0.0
  %103 = vmatpush1.msra.mxu0 %v46
  %104 = vmatprep.subr.mxu0 0.0
  %105 = vmatpush1.msra.mxu0 0.0
  %106 = vmatprep.subr.mxu0 0.0
  %107 = vmatpush1.msra.mxu0 0.0
  %108 = vmatprep.subr.mxu0 0.0
  %109 = vmatpush1.msra.mxu0 0.0
  %110 = vmatprep.subr.mxu0 0.0
  %111 = vmatpush1.msra.mxu0 0.0
  %112 = vmatprep.subr.mxu0 0.0
  %113 = vmatpush1.msra.mxu0 0.0
  %114 = vmatprep.subr.mxu0 0.0
  %115 = vmatpush1.msra.mxu0 0.0
  %116 = vmatprep.subr.mxu0 0.0
  %117 = vmatpush1.msra.mxu0 0.0
  %118 = vmatprep.subr.mxu0 0.0
  %119 = vmatpush1.msra.mxu0 0.0
  %120 = vmatprep.subr.mxu0 0.0
  %121 = vmatpush1.msra.mxu0 0.0
  %122 = vmatprep.subr.mxu0 0.0
  %123 = vmatpush1.msra.mxu0 0.0
  %124 = vmatprep.subr.mxu0 0.0
  %125 = vmatpush1.msra.mxu0 0.0
  %126 = vmatprep.subr.mxu0 0.0
  %127 = vmatpush1.msra.mxu0 0.0
  %128 = vmatprep.subr.mxu0 0.0
  %129 = vmatpush1.msra.mxu0 0.0
  %130 = vmatprep.subr.mxu0 0.0
  %131 = vmatpush1.msra.mxu0 0.0
  %132 = vmatprep.subr.mxu0 0.0
  %133 = vmatpush1.msra.mxu0 0.0
  %134 = vmatprep.subr.mxu0 0.0
  %135 = vmatpush1.msra.mxu0 0.0
  %136 = vmatprep.subr.mxu0 0.0
  %137 = vmatpush1.msra.mxu0 0.0
  %138 = vmatprep.subr.mxu0 0.0
  %139 = vmatpush1.msra.mxu0 0.0
  %140 = vmatprep.subr.mxu0 0.0
  %141 = vmatpush1.msra.mxu0 0.0
  %142 = vmatprep.subr.mxu0 0.0
  %143 = vmatpush1.msra.mxu0 0.0
  %144 = vmatprep.subr.mxu0 0.0
  %145 = vmatpush1.msra.mxu0 0.0
  %146 = vmatprep.subr.mxu0 0.0
  %147 = vmatpush1.msra.mxu0 0.0
  %148 = vmatprep.subr.mxu0 0.0
  %149 = vmatpush1.msra.mxu0 0.0
  %150 = vmatprep.subr.mxu0 0.0
  %151 = vmatpush1.msra.mxu0 0.0
  %152 = vmatprep.subr.mxu0 0.0
  %153 = vmatpush1.msra.mxu0 0.0
  %154 = vmatprep.subr.mxu0 0.0
  %155 = vmatpush1.msra.mxu0 0.0
  %156 = vmatprep.subr.mxu0 0.0
  %157 = vmatpush1.msra.mxu0 0.0
  %158 = vmatprep.subr.mxu0 0.0
  %159 = vmatpush1.msra.mxu0 0.0
  %160 = vmatprep.subr.mxu0 0.0
  %161 = vmatpush1.msra.mxu0 0.0
  %162 = vmatprep.subr.mxu0 0.0
  %163 = vmatpush1.msra.mxu0 0.0
  %164 = vmatprep.mubr.f32.mxu0 0.0
  %165 = vmatmul.mubr.f32.gmra.mrb[0].mxu0 %v53
  %v166 = vpop.f32.mrb[0].mxu0
  %v167 = vadd.f32 %v50, %v166
  %v168 = vpop.f32.mrb[0].mxu0
  %169 = vmatprep.mubr.f32.mxu0 0.0
  %170 = vmatmul.mubr.f32.gmra.mrb[0].mxu0 %v56
  %v171 = vpop.f32.mrb[0].mxu0
  %v172 = vadd.f32 %v50, %v171
  %v173 = vpop.f32.mrb[0].mxu0
  %174 = vmatprep.mubr.f32.mxu0 0.0
  %175 = vmatmul.mubr.f32.gmra.mrb[0].mxu0 %v59
  %v176 = vpop.f32.mrb[0].mxu0
  %v177 = vadd.f32 %v50, %v176
  %v178 = vpop.f32.mrb[0].mxu0
  %179 = vmatprep.mubr.f32.mxu0 0.0
  %180 = vmatmul.mubr.f32.gmra.mrb[0].mxu0 %v62
  %v181 = vpop.f32.mrb[0].mxu0
  %v182 = vadd.f32 %v50, %v181
  %v183 = vpop.f32.mrb[0].mxu0
  %184 = vmatprep.mubr.f32.mxu0 0.0
  %185 = vmatmul.mubr.f32.gmra.mrb[0].mxu0 %v65
  %v186 = vpop.f32.mrb[0].mxu0
  %v187 = vadd.f32 %v50, %v186
  %v188 = vpop.f32.mrb[0].mxu0
  %189 = vmatprep.mubr.f32.mxu0 0.0
  %190 = vmatmul.mubr.f32.gmra.mrb[0].mxu0 %v68
  %v191 = vpop.f32.mrb[0].mxu0
  %v192 = vadd.f32 %v50, %v191
  %v193 = vpop.f32.mrb[0].mxu0
  %194 = vmatprep.mubr.f32.mxu0 0.0
  %195 = vmatmul.mubr.f32.gmra.mrb[0].mxu0 %v71
  %v196 = vpop.f32.mrb[0].mxu0
  %v197 = vadd.f32 %v50, %v196
  %v198 = vpop.f32.mrb[0].mxu0
  %199 = vmatprep.mubr.f32.mxu0 0.0
  %200 = vmatmul.mubr.f32.gmra.mrb[0].mxu0 %v74
  %v201 = vpop.f32.mrb[0].mxu0
  %v202 = vadd.f32 %v50, %v201
  %v203 = vpop.f32.mrb[0].mxu0
  %204 = vmatprep.mubr.f32.mxu0 0.0
  %205 = vmatmul.mubr.f32.gmra.mrb[0].mxu0 %v77
  %v206 = vpop.f32.mrb[0].mxu0
  %v207 = vadd.f32 %v50, %v206
  %v208 = vpop.f32.mrb[0].mxu0
  %209 = vmatprep.mubr.f32.mxu0 0.0
  %210 = vmatmul.mubr.f32.gmra.mrb[0].mxu0 %v80
  %v211 = vpop.f32.mrb[0].mxu0
  %v212 = vadd.f32 %v50, %v211
  %v213 = vpop.f32.mrb[0].mxu0
  %214 = vmatprep.mubr.f32.mxu0 0.0
  %215 = vmatmul.mubr.f32.gmra.mrb[0].mxu0 %v83
  %v216 = vpop.f32.mrb[0].mxu0
  %v217 = vadd.f32 %v50, %v216
  %v218 = vpop.f32.mrb[0].mxu0
  %219 = vmatprep.mubr.f32.mxu0 0.0
  %220 = vmatmul.mubr.f32.gmra.mrb[0].mxu0 %v86
  %v221 = vpop.f32.mrb[0].mxu0
  %v222 = vadd.f32 %v50, %v221
  %v223 = vpop.f32.mrb[0].mxu0
  %224 = vmatprep.mubr.f32.mxu0 0.0
  %225 = vmatmul.mubr.f32.gmra.mrb[0].mxu0 %v89
  %v226 = vpop.f32.mrb[0].mxu0
  %v227 = vadd.f32 %v50, %v226
  %v228 = vpop.f32.mrb[0].mxu0
  %229 = vmatprep.mubr.f32.mxu0 0.0
  %230 = vmatmul.mubr.f32.gmra.mrb[0].mxu0 %v92
  %v231 = vpop.f32.mrb[0].mxu0
  %v232 = vadd.f32 %v50, %v231
  %v233 = vpop.f32.mrb[0].mxu0
  %234 = vmatprep.mubr.f32.mxu0 0.0
  %235 = vmatmul.mubr.f32.gmra.mrb[0].mxu0 %v95
  %v236 = vpop.f32.mrb[0].mxu0
  %v237 = vadd.f32 %v50, %v236
  %v238 = vpop.f32.mrb[0].mxu0
  %239 = vmatprep.mubr.f32.mxu0 0.0
  %240 = vmatmul.mubr.f32.gmra.mrb[0].mxu0 %v98
  %v241 = vpop.f32.mrb[0].mxu0
  %v242 = vadd.f32 %v50, %v241
  %v243 = vpop.f32.mrb[0].mxu0
  %244 = vdwg.mxu0
  %v245 = vmax.f32 %v167, 0.0
  %v246 = vmax.f32 %v172, 0.0
  %v247 = vmax.f32 %v177, 0.0
  %v248 = vmax.f32 %v182, 0.0
  %v249 = vmax.f32 %v187, 0.0
  %v250 = vmax.f32 %v192, 0.0
  %v251 = vmax.f32 %v197, 0.0
  %v252 = vmax.f32 %v202, 0.0
  %v253 = vmax.f32 %v207, 0.0
  %v254 = vmax.f32 %v212, 0.0
  %v255 = vmax.f32 %v217, 0.0
  %v256 = vmax.f32 %v222, 0.0
  %v257 = vmax.f32 %v227, 0.0
  %v258 = vmax.f32 %v232, 0.0
  %v259 = vmax.f32 %v237, 0.0
  %v260 = vmax.f32 %v242, 0.0
  %v261 = vld [vmem:[%s3] sm:$0xff]
  %v262 = vld [vmem:[%s3 + $0x8] sm:$0xff]
  %v263 = vld [vmem:[%s3 + $0x10] sm:$0xff]
  %v264 = vld [vmem:[%s3 + $0x18] sm:$0xff]
  %v265 = vlaneseq
  %v266 = vshrl.u32 %v265, 7
  %v267 = vsub.s32 1, %v266
  %v268 = vrot.slane %v28, %v267
  %vm269 = vcmask 261120
  %v271 = vsel %vm269, %v245, 0
  %v274 = vsel %vm269, %v246, 0
  %v277 = vsel %vm269, %v247, 0
  %v280 = vsel %vm269, %v248, 0
  %v283 = vsel %vm269, %v249, 0
  %v286 = vsel %vm269, %v250, 0
  %v289 = vsel %vm269, %v251, 0
  %v292 = vsel %vm269, %v252, 0
  %v295 = vsel %vm269, %v253, 0
  %v298 = vsel %vm269, %v254, 0
  %v301 = vsel %vm269, %v255, 0
  %v304 = vsel %vm269, %v256, 0
  %v307 = vsel %vm269, %v257, 0
  %v310 = vsel %vm269, %v258, 0
  %v313 = vsel %vm269, %v259, 0
  %v316 = vsel %vm269, %v260, 0
  %318 = vmatprep.subr.mxu0 0.0
  %319 = vmatpush1.msra.mxu0 %v261
  %320 = vmatprep.subr.mxu0 0.0
  %321 = vmatpush1.msra.mxu0 %v262
  %322 = vmatprep.subr.mxu0 0.0
  %323 = vmatpush1.msra.mxu0 %v263
  %324 = vmatprep.subr.mxu0 0.0
  %325 = vmatpush1.msra.mxu0 %v264
  %326 = vmatprep.subr.mxu0 0.0
  %327 = vmatpush1.msra.mxu0 0.0
  %328 = vmatprep.subr.mxu0 0.0
  %329 = vmatpush1.msra.mxu0 0.0
  %330 = vmatprep.subr.mxu0 0.0
  %331 = vmatpush1.msra.mxu0 0.0
  %332 = vmatprep.subr.mxu0 0.0
  %333 = vmatpush1.msra.mxu0 0.0
  %334 = vmatprep.subr.mxu0 0.0
  %335 = vmatpush1.msra.mxu0 0.0
  %336 = vmatprep.subr.mxu0 0.0
  %337 = vmatpush1.msra.mxu0 0.0
  %338 = vmatprep.subr.mxu0 0.0
  %339 = vmatpush1.msra.mxu0 0.0
  %340 = vmatprep.subr.mxu0 0.0
  %341 = vmatpush1.msra.mxu0 0.0
  %342 = vmatprep.subr.mxu0 0.0
  %343 = vmatpush1.msra.mxu0 0.0
  %344 = vmatprep.subr.mxu0 0.0
  %345 = vmatpush1.msra.mxu0 0.0
  %346 = vmatprep.subr.mxu0 0.0
  %347 = vmatpush1.msra.mxu0 0.0
  %348 = vmatprep.subr.mxu0 0.0
  %349 = vmatpush1.msra.mxu0 0.0
  %350 = vmatprep.subr.mxu0 0.0
  %351 = vmatpush1.msra.mxu0 0.0
  %352 = vmatprep.subr.mxu0 0.0
  %353 = vmatpush1.msra.mxu0 0.0
  %354 = vmatprep.subr.mxu0 0.0
  %355 = vmatpush1.msra.mxu0 0.0
  %356 = vmatprep.subr.mxu0 0.0
  %357 = vmatpush1.msra.mxu0 0.0
  %358 = vmatprep.subr.mxu0 0.0
  %359 = vmatpush1.msra.mxu0 0.0
  %360 = vmatprep.subr.mxu0 0.0
  %361 = vmatpush1.msra.mxu0 0.0
  %362 = vmatprep.subr.mxu0 0.0
  %363 = vmatpush1.msra.mxu0 0.0
  %364 = vmatprep.subr.mxu0 0.0
  %365 = vmatpush1.msra.mxu0 0.0
  %366 = vmatprep.subr.mxu0 0.0
  %367 = vmatpush1.msra.mxu0 0.0
  %368 = vmatprep.subr.mxu0 0.0
  %369 = vmatpush1.msra.mxu0 0.0
  %370 = vmatprep.subr.mxu0 0.0
  %371 = vmatpush1.msra.mxu0 0.0
  %372 = vmatprep.subr.mxu0 0.0
  %373 = vmatpush1.msra.mxu0 0.0
  %374 = vmatprep.subr.mxu0 0.0
  %375 = vmatpush1.msra.mxu0 0.0
  %376 = vmatprep.subr.mxu0 0.0
  %377 = vmatpush1.msra.mxu0 0.0
  %378 = vmatprep.subr.mxu0 0.0
  %379 = vmatpush1.msra.mxu0 0.0
  %380 = vmatprep.subr.mxu0 0.0
  %381 = vmatpush1.msra.mxu0 0.0
  %382 = vmatprep.mubr.f32.mxu0 0.0
  %383 = vmatmul.mubr.f32.gmra.mrb[0].mxu0 %v271
  %v384 = vpop.f32.mrb[0].mxu0
  %v385 = vadd.f32 %v268, %v384
  %v386 = vpop.f32.mrb[0].mxu0
  %387 = vmatprep.mubr.f32.mxu0 0.0
  %388 = vmatmul.mubr.f32.gmra.mrb[0].mxu0 %v274
  %v389 = vpop.f32.mrb[0].mxu0
  %v390 = vadd.f32 %v268, %v389
  %v391 = vpop.f32.mrb[0].mxu0
  %392 = vmatprep.mubr.f32.mxu0 0.0
  %393 = vmatmul.mubr.f32.gmra.mrb[0].mxu0 %v277
  %v394 = vpop.f32.mrb[0].mxu0
  %v395 = vadd.f32 %v268, %v394
  %v396 = vpop.f32.mrb[0].mxu0
  %397 = vmatprep.mubr.f32.mxu0 0.0
  %398 = vmatmul.mubr.f32.gmra.mrb[0].mxu0 %v280
  %v399 = vpop.f32.mrb[0].mxu0
  %v400 = vadd.f32 %v268, %v399
  %v401 = vpop.f32.mrb[0].mxu0
  %402 = vmatprep.mubr.f32.mxu0 0.0
  %403 = vmatmul.mubr.f32.gmra.mrb[0].mxu0 %v283
  %v404 = vpop.f32.mrb[0].mxu0
  %v405 = vadd.f32 %v268, %v404
  %v406 = vpop.f32.mrb[0].mxu0
  %407 = vmatprep.mubr.f32.mxu0 0.0
  %408 = vmatmul.mubr.f32.gmra.mrb[0].mxu0 %v286
  %v409 = vpop.f32.mrb[0].mxu0
  %v410 = vadd.f32 %v268, %v409
  %v411 = vpop.f32.mrb[0].mxu0
  %412 = vmatprep.mubr.f32.mxu0 0.0
  %413 = vmatmul.mubr.f32.gmra.mrb[0].mxu0 %v289
  %v414 = vpop.f32.mrb[0].mxu0
  %v415 = vadd.f32 %v268, %v414
  %v416 = vpop.f32.mrb[0].mxu0
  %417 = vmatprep.mubr.f32.mxu0 0.0
  %418 = vmatmul.mubr.f32.gmra.mrb[0].mxu0 %v292
  %v419 = vpop.f32.mrb[0].mxu0
  %v420 = vadd.f32 %v268, %v419
  %v421 = vpop.f32.mrb[0].mxu0
  %422 = vmatprep.mubr.f32.mxu0 0.0
  %423 = vmatmul.mubr.f32.gmra.mrb[0].mxu0 %v295
  %v424 = vpop.f32.mrb[0].mxu0
  %v425 = vadd.f32 %v268, %v424
  %v426 = vpop.f32.mrb[0].mxu0
  %427 = vmatprep.mubr.f32.mxu0 0.0
  %428 = vmatmul.mubr.f32.gmra.mrb[0].mxu0 %v298
  %v429 = vpop.f32.mrb[0].mxu0
  %v430 = vadd.f32 %v268, %v429
  %v431 = vpop.f32.mrb[0].mxu0
  %432 = vmatprep.mubr.f32.mxu0 0.0
  %433 = vmatmul.mubr.f32.gmra.mrb[0].mxu0 %v301
  %v434 = vpop.f32.mrb[0].mxu0
  %v435 = vadd.f32 %v268, %v434
  %v436 = vpop.f32.mrb[0].mxu0
  %437 = vmatprep.mubr.f32.mxu0 0.0
  %438 = vmatmul.mubr.f32.gmra.mrb[0].mxu0 %v304
  %v439 = vpop.f32.mrb[0].mxu0
  %v440 = vadd.f32 %v268, %v439
  %v441 = vpop.f32.mrb[0].mxu0
  %442 = vmatprep.mubr.f32.mxu0 0.0
  %443 = vmatmul.mubr.f32.gmra.mrb[0].mxu0 %v307
  %v444 = vpop.f32.mrb[0].mxu0
  %v445 = vadd.f32 %v268, %v444
  %v446 = vpop.f32.mrb[0].mxu0
  %447 = vmatprep.mubr.f32.mxu0 0.0
  %448 = vmatmul.mubr.f32.gmra.mrb[0].mxu0 %v310
  %v449 = vpop.f32.mrb[0].mxu0
  %v450 = vadd.f32 %v268, %v449
  %v451 = vpop.f32.mrb[0].mxu0
  %452 = vmatprep.mubr.f32.mxu0 0.0
  %453 = vmatmul.mubr.f32.gmra.mrb[0].mxu0 %v313
  %v454 = vpop.f32.mrb[0].mxu0
  %v455 = vadd.f32 %v268, %v454
  %v456 = vpop.f32.mrb[0].mxu0
  %457 = vmatprep.mubr.f32.mxu0 0.0
  %458 = vmatmul.mubr.f32.gmra.mrb[0].mxu0 %v316
  %v459 = vpop.f32.mrb[0].mxu0
  %v460 = vadd.f32 %v268, %v459
  %v461 = vpop.f32.mrb[0].mxu0
  %462 = vdwg.mxu0
  %v463 = vmax.f32 %v385, 0.0
  %v464 = vmax.f32 %v390, 0.0
  %v465 = vmax.f32 %v395, 0.0
  %v466 = vmax.f32 %v400, 0.0
  %v467 = vmax.f32 %v405, 0.0
  %v468 = vmax.f32 %v410, 0.0
  %v469 = vmax.f32 %v415, 0.0
  %v470 = vmax.f32 %v420, 0.0
  %v471 = vmax.f32 %v425, 0.0
  %v472 = vmax.f32 %v430, 0.0
  %v473 = vmax.f32 %v435, 0.0
  %v474 = vmax.f32 %v440, 0.0
  %v475 = vmax.f32 %v445, 0.0
  %v476 = vmax.f32 %v450, 0.0
  %v477 = vmax.f32 %v455, 0.0
  %v478 = vmax.f32 %v460, 0.0
  %s479 = scalar_lea.vmem %s3, 32
  %v480 = vld [vmem:[%s479] sm:$0xff]
  %v481 = vld [vmem:[%s479 + $0x8] sm:$0xff]
  %v482 = vld [vmem:[%s479 + $0x10] sm:$0xff]
  %v483 = vld [vmem:[%s479 + $0x18] sm:$0xff]
  %v484 = vlaneseq
  %v485 = vshrl.u32 %v484, 7
  %v486 = vsub.s32 2, %v485
  %v487 = vrot.slane %v28, %v486
  %v489 = vsel %vm269, %v463, 0
  %v492 = vsel %vm269, %v464, 0
  %v495 = vsel %vm269, %v465, 0
  %v498 = vsel %vm269, %v466, 0
  %v501 = vsel %vm269, %v467, 0
  %v504 = vsel %vm269, %v468, 0
  %v507 = vsel %vm269, %v469, 0
  %v510 = vsel %vm269, %v470, 0
  %v513 = vsel %vm269, %v471, 0
  %v516 = vsel %vm269, %v472, 0
  %v519 = vsel %vm269, %v473, 0
  %v522 = vsel %vm269, %v474, 0
  %v525 = vsel %vm269, %v475, 0
  %v528 = vsel %vm269, %v476, 0
  %v531 = vsel %vm269, %v477, 0
  %v534 = vsel %vm269, %v478, 0
  %536 = vmatprep.subr.mxu0 0.0
  %537 = vmatpush1.msra.mxu0 %v480
  %538 = vmatprep.subr.mxu0 0.0
  %539 = vmatpush1.msra.mxu0 %v481
  %540 = vmatprep.subr.mxu0 0.0
  %541 = vmatpush1.msra.mxu0 %v482
  %542 = vmatprep.subr.mxu0 0.0
  %543 = vmatpush1.msra.mxu0 %v483
  %544 = vmatprep.subr.mxu0 0.0
  %545 = vmatpush1.msra.mxu0 0.0
  %546 = vmatprep.subr.mxu0 0.0
  %547 = vmatpush1.msra.mxu0 0.0
  %548 = vmatprep.subr.mxu0 0.0
  %549 = vmatpush1.msra.mxu0 0.0
  %550 = vmatprep.subr.mxu0 0.0
  %551 = vmatpush1.msra.mxu0 0.0
  %552 = vmatprep.subr.mxu0 0.0
  %553 = vmatpush1.msra.mxu0 0.0
  %554 = vmatprep.subr.mxu0 0.0
  %555 = vmatpush1.msra.mxu0 0.0
  %556 = vmatprep.subr.mxu0 0.0
  %557 = vmatpush1.msra.mxu0 0.0
  %558 = vmatprep.subr.mxu0 0.0
  %559 = vmatpush1.msra.mxu0 0.0
  %560 = vmatprep.subr.mxu0 0.0
  %561 = vmatpush1.msra.mxu0 0.0
  %562 = vmatprep.subr.mxu0 0.0
  %563 = vmatpush1.msra.mxu0 0.0
  %564 = vmatprep.subr.mxu0 0.0
  %565 = vmatpush1.msra.mxu0 0.0
  %566 = vmatprep.subr.mxu0 0.0
  %567 = vmatpush1.msra.mxu0 0.0
  %568 = vmatprep.subr.mxu0 0.0
  %569 = vmatpush1.msra.mxu0 0.0
  %570 = vmatprep.subr.mxu0 0.0
  %571 = vmatpush1.msra.mxu0 0.0
  %572 = vmatprep.subr.mxu0 0.0
  %573 = vmatpush1.msra.mxu0 0.0
  %574 = vmatprep.subr.mxu0 0.0
  %575 = vmatpush1.msra.mxu0 0.0
  %576 = vmatprep.subr.mxu0 0.0
  %577 = vmatpush1.msra.mxu0 0.0
  %578 = vmatprep.subr.mxu0 0.0
  %579 = vmatpush1.msra.mxu0 0.0
  %580 = vmatprep.subr.mxu0 0.0
  %581 = vmatpush1.msra.mxu0 0.0
  %582 = vmatprep.subr.mxu0 0.0
  %583 = vmatpush1.msra.mxu0 0.0
  %584 = vmatprep.subr.mxu0 0.0
  %585 = vmatpush1.msra.mxu0 0.0
  %586 = vmatprep.subr.mxu0 0.0
  %587 = vmatpush1.msra.mxu0 0.0
  %588 = vmatprep.subr.mxu0 0.0
  %589 = vmatpush1.msra.mxu0 0.0
  %590 = vmatprep.subr.mxu0 0.0
  %591 = vmatpush1.msra.mxu0 0.0
  %592 = vmatprep.subr.mxu0 0.0
  %593 = vmatpush1.msra.mxu0 0.0
  %594 = vmatprep.subr.mxu0 0.0
  %595 = vmatpush1.msra.mxu0 0.0
  %596 = vmatprep.subr.mxu0 0.0
  %597 = vmatpush1.msra.mxu0 0.0
  %598 = vmatprep.subr.mxu0 0.0
  %599 = vmatpush1.msra.mxu0 0.0
  %600 = vmatprep.mubr.f32.mxu0 0.0
  %601 = vmatmul.mubr.f32.gmra.mrb[0].mxu0 %v489
  %v602 = vpop.f32.mrb[0].mxu0
  %v603 = vadd.f32 %v487, %v602
  %v604 = vpop.f32.mrb[0].mxu0
  %605 = vmatprep.mubr.f32.mxu0 0.0
  %606 = vmatmul.mubr.f32.gmra.mrb[0].mxu0 %v492
  %v607 = vpop.f32.mrb[0].mxu0
  %v608 = vadd.f32 %v487, %v607
  %v609 = vpop.f32.mrb[0].mxu0
  %610 = vmatprep.mubr.f32.mxu0 0.0
  %611 = vmatmul.mubr.f32.gmra.mrb[0].mxu0 %v495
  %v612 = vpop.f32.mrb[0].mxu0
  %v613 = vadd.f32 %v487, %v612
  %v614 = vpop.f32.mrb[0].mxu0
  %615 = vmatprep.mubr.f32.mxu0 0.0
  %616 = vmatmul.mubr.f32.gmra.mrb[0].mxu0 %v498
  %v617 = vpop.f32.mrb[0].mxu0
  %v618 = vadd.f32 %v487, %v617
  %v619 = vpop.f32.mrb[0].mxu0
  %620 = vmatprep.mubr.f32.mxu0 0.0
  %621 = vmatmul.mubr.f32.gmra.mrb[0].mxu0 %v501
  %v622 = vpop.f32.mrb[0].mxu0
  %v623 = vadd.f32 %v487, %v622
  %v624 = vpop.f32.mrb[0].mxu0
  %625 = vmatprep.mubr.f32.mxu0 0.0
  %626 = vmatmul.mubr.f32.gmra.mrb[0].mxu0 %v504
  %v627 = vpop.f32.mrb[0].mxu0
  %v628 = vadd.f32 %v487, %v627
  %v629 = vpop.f32.mrb[0].mxu0
  %630 = vmatprep.mubr.f32.mxu0 0.0
  %631 = vmatmul.mubr.f32.gmra.mrb[0].mxu0 %v507
  %v632 = vpop.f32.mrb[0].mxu0
  %v633 = vadd.f32 %v487, %v632
  %v634 = vpop.f32.mrb[0].mxu0
  %635 = vmatprep.mubr.f32.mxu0 0.0
  %636 = vmatmul.mubr.f32.gmra.mrb[0].mxu0 %v510
  %v637 = vpop.f32.mrb[0].mxu0
  %v638 = vadd.f32 %v487, %v637
  %v639 = vpop.f32.mrb[0].mxu0
  %640 = vmatprep.mubr.f32.mxu0 0.0
  %641 = vmatmul.mubr.f32.gmra.mrb[0].mxu0 %v513
  %v642 = vpop.f32.mrb[0].mxu0
  %v643 = vadd.f32 %v487, %v642
  %v644 = vpop.f32.mrb[0].mxu0
  %645 = vmatprep.mubr.f32.mxu0 0.0
  %646 = vmatmul.mubr.f32.gmra.mrb[0].mxu0 %v516
  %v647 = vpop.f32.mrb[0].mxu0
  %v648 = vadd.f32 %v487, %v647
  %v649 = vpop.f32.mrb[0].mxu0
  %650 = vmatprep.mubr.f32.mxu0 0.0
  %651 = vmatmul.mubr.f32.gmra.mrb[0].mxu0 %v519
  %v652 = vpop.f32.mrb[0].mxu0
  %v653 = vadd.f32 %v487, %v652
  %v654 = vpop.f32.mrb[0].mxu0
  %655 = vmatprep.mubr.f32.mxu0 0.0
  %656 = vmatmul.mubr.f32.gmra.mrb[0].mxu0 %v522
  %v657 = vpop.f32.mrb[0].mxu0
  %v658 = vadd.f32 %v487, %v657
  %v659 = vpop.f32.mrb[0].mxu0
  %660 = vmatprep.mubr.f32.mxu0 0.0
  %661 = vmatmul.mubr.f32.gmra.mrb[0].mxu0 %v525
  %v662 = vpop.f32.mrb[0].mxu0
  %v663 = vadd.f32 %v487, %v662
  %v664 = vpop.f32.mrb[0].mxu0
  %665 = vmatprep.mubr.f32.mxu0 0.0
  %666 = vmatmul.mubr.f32.gmra.mrb[0].mxu0 %v528
  %v667 = vpop.f32.mrb[0].mxu0
  %v668 = vadd.f32 %v487, %v667
  %v669 = vpop.f32.mrb[0].mxu0
  %670 = vmatprep.mubr.f32.mxu0 0.0
  %671 = vmatmul.mubr.f32.gmra.mrb[0].mxu0 %v531
  %v672 = vpop.f32.mrb[0].mxu0
  %v673 = vadd.f32 %v487, %v672
  %v674 = vpop.f32.mrb[0].mxu0
  %675 = vmatprep.mubr.f32.mxu0 0.0
  %676 = vmatmul.mubr.f32.gmra.mrb[0].mxu0 %v534
  %v677 = vpop.f32.mrb[0].mxu0
  %v678 = vadd.f32 %v487, %v677
  %v679 = vpop.f32.mrb[0].mxu0
  %680 = vdwg.mxu0
  %v681 = vmax.f32 %v603, 0.0
  %v682 = vmax.f32 %v608, 0.0
  %v683 = vmax.f32 %v613, 0.0
  %v684 = vmax.f32 %v618, 0.0
  %v685 = vmax.f32 %v623, 0.0
  %v686 = vmax.f32 %v628, 0.0
  %v687 = vmax.f32 %v633, 0.0
  %v688 = vmax.f32 %v638, 0.0
  %v689 = vmax.f32 %v643, 0.0
  %v690 = vmax.f32 %v648, 0.0
  %v691 = vmax.f32 %v653, 0.0
  %v692 = vmax.f32 %v658, 0.0
  %v693 = vmax.f32 %v663, 0.0
  %v694 = vmax.f32 %v668, 0.0
  %v695 = vmax.f32 %v673, 0.0
  %v696 = vmax.f32 %v678, 0.0
  %s697 = scalar_lea.vmem %s3, 64
  %v698 = vld [vmem:[%s697] sm:$0xff]
  %v699 = vld [vmem:[%s697 + $0x8] sm:$0xff]
  %v700 = vld [vmem:[%s697 + $0x10] sm:$0xff]
  %v701 = vld [vmem:[%s697 + $0x18] sm:$0xff]
  %v702 = vlaneseq
  %v703 = vshrl.u32 %v702, 7
  %v704 = vsub.s32 3, %v703
  %v705 = vrot.slane %v28, %v704
  %v707 = vsel %vm269, %v681, 0
  %v710 = vsel %vm269, %v682, 0
  %v713 = vsel %vm269, %v683, 0
  %v716 = vsel %vm269, %v684, 0
  %v719 = vsel %vm269, %v685, 0
  %v722 = vsel %vm269, %v686, 0
  %v725 = vsel %vm269, %v687, 0
  %v728 = vsel %vm269, %v688, 0
  %v731 = vsel %vm269, %v689, 0
  %v734 = vsel %vm269, %v690, 0
  %v737 = vsel %vm269, %v691, 0
  %v740 = vsel %vm269, %v692, 0
  %v743 = vsel %vm269, %v693, 0
  %v746 = vsel %vm269, %v694, 0
  %v749 = vsel %vm269, %v695, 0
  %v752 = vsel %vm269, %v696, 0
  %754 = vmatprep.subr.mxu0 0.0
  %755 = vmatpush1.msra.mxu0 %v698
  %756 = vmatprep.subr.mxu0 0.0
  %757 = vmatpush1.msra.mxu0 %v699
  %758 = vmatprep.subr.mxu0 0.0
  %759 = vmatpush1.msra.mxu0 %v700
  %760 = vmatprep.subr.mxu0 0.0
  %761 = vmatpush1.msra.mxu0 %v701
  %762 = vmatprep.subr.mxu0 0.0
  %763 = vmatpush1.msra.mxu0 0.0
  %764 = vmatprep.subr.mxu0 0.0
  %765 = vmatpush1.msra.mxu0 0.0
  %766 = vmatprep.subr.mxu0 0.0
  %767 = vmatpush1.msra.mxu0 0.0
  %768 = vmatprep.subr.mxu0 0.0
  %769 = vmatpush1.msra.mxu0 0.0
  %770 = vmatprep.subr.mxu0 0.0
  %771 = vmatpush1.msra.mxu0 0.0
  %772 = vmatprep.subr.mxu0 0.0
  %773 = vmatpush1.msra.mxu0 0.0
  %774 = vmatprep.subr.mxu0 0.0
  %775 = vmatpush1.msra.mxu0 0.0
  %776 = vmatprep.subr.mxu0 0.0
  %777 = vmatpush1.msra.mxu0 0.0
  %778 = vmatprep.subr.mxu0 0.0
  %779 = vmatpush1.msra.mxu0 0.0
  %780 = vmatprep.subr.mxu0 0.0
  %781 = vmatpush1.msra.mxu0 0.0
  %782 = vmatprep.subr.mxu0 0.0
  %783 = vmatpush1.msra.mxu0 0.0
  %784 = vmatprep.subr.mxu0 0.0
  %785 = vmatpush1.msra.mxu0 0.0
  %786 = vmatprep.subr.mxu0 0.0
  %787 = vmatpush1.msra.mxu0 0.0
  %788 = vmatprep.subr.mxu0 0.0
  %789 = vmatpush1.msra.mxu0 0.0
  %790 = vmatprep.subr.mxu0 0.0
  %791 = vmatpush1.msra.mxu0 0.0
  %792 = vmatprep.subr.mxu0 0.0
  %793 = vmatpush1.msra.mxu0 0.0
  %794 = vmatprep.subr.mxu0 0.0
  %795 = vmatpush1.msra.mxu0 0.0
  %796 = vmatprep.subr.mxu0 0.0
  %797 = vmatpush1.msra.mxu0 0.0
  %798 = vmatprep.subr.mxu0 0.0
  %799 = vmatpush1.msra.mxu0 0.0
  %800 = vmatprep.subr.mxu0 0.0
  %801 = vmatpush1.msra.mxu0 0.0
  %802 = vmatprep.subr.mxu0 0.0
  %803 = vmatpush1.msra.mxu0 0.0
  %804 = vmatprep.subr.mxu0 0.0
  %805 = vmatpush1.msra.mxu0 0.0
  %806 = vmatprep.subr.mxu0 0.0
  %807 = vmatpush1.msra.mxu0 0.0
  %808 = vmatprep.subr.mxu0 0.0
  %809 = vmatpush1.msra.mxu0 0.0
  %810 = vmatprep.subr.mxu0 0.0
  %811 = vmatpush1.msra.mxu0 0.0
  %812 = vmatprep.subr.mxu0 0.0
  %813 = vmatpush1.msra.mxu0 0.0
  %814 = vmatprep.subr.mxu0 0.0
  %815 = vmatpush1.msra.mxu0 0.0
  %816 = vmatprep.subr.mxu0 0.0
  %817 = vmatpush1.msra.mxu0 0.0
  %818 = vmatprep.mubr.f32.mxu0 0.0
  %819 = vmatmul.mubr.f32.gmra.mrb[0].mxu0 %v707
  %v820 = vpop.f32.mrb[0].mxu0
  %v821 = vadd.f32 %v705, %v820
  %v822 = vpop.f32.mrb[0].mxu0
  %823 = vmatprep.mubr.f32.mxu0 0.0
  %824 = vmatmul.mubr.f32.gmra.mrb[0].mxu0 %v710
  %v825 = vpop.f32.mrb[0].mxu0
  %v826 = vadd.f32 %v705, %v825
  %v827 = vpop.f32.mrb[0].mxu0
  %828 = vmatprep.mubr.f32.mxu0 0.0
  %829 = vmatmul.mubr.f32.gmra.mrb[0].mxu0 %v713
  %v830 = vpop.f32.mrb[0].mxu0
  %v831 = vadd.f32 %v705, %v830
  %v832 = vpop.f32.mrb[0].mxu0
  %833 = vmatprep.mubr.f32.mxu0 0.0
  %834 = vmatmul.mubr.f32.gmra.mrb[0].mxu0 %v716
  %v835 = vpop.f32.mrb[0].mxu0
  %v836 = vadd.f32 %v705, %v835
  %v837 = vpop.f32.mrb[0].mxu0
  %838 = vmatprep.mubr.f32.mxu0 0.0
  %839 = vmatmul.mubr.f32.gmra.mrb[0].mxu0 %v719
  %v840 = vpop.f32.mrb[0].mxu0
  %v841 = vadd.f32 %v705, %v840
  %v842 = vpop.f32.mrb[0].mxu0
  %843 = vmatprep.mubr.f32.mxu0 0.0
  %844 = vmatmul.mubr.f32.gmra.mrb[0].mxu0 %v722
  %v845 = vpop.f32.mrb[0].mxu0
  %v846 = vadd.f32 %v705, %v845
  %v847 = vpop.f32.mrb[0].mxu0
  %848 = vmatprep.mubr.f32.mxu0 0.0
  %849 = vmatmul.mubr.f32.gmra.mrb[0].mxu0 %v725
  %v850 = vpop.f32.mrb[0].mxu0
  %v851 = vadd.f32 %v705, %v850
  %v852 = vpop.f32.mrb[0].mxu0
  %853 = vmatprep.mubr.f32.mxu0 0.0
  %854 = vmatmul.mubr.f32.gmra.mrb[0].mxu0 %v728
  %v855 = vpop.f32.mrb[0].mxu0
  %v856 = vadd.f32 %v705, %v855
  %v857 = vpop.f32.mrb[0].mxu0
  %858 = vmatprep.mubr.f32.mxu0 0.0
  %859 = vmatmul.mubr.f32.gmra.mrb[0].mxu0 %v731
  %v860 = vpop.f32.mrb[0].mxu0
  %v861 = vadd.f32 %v705, %v860
  %v862 = vpop.f32.mrb[0].mxu0
  %863 = vmatprep.mubr.f32.mxu0 0.0
  %864 = vmatmul.mubr.f32.gmra.mrb[0].mxu0 %v734
  %v865 = vpop.f32.mrb[0].mxu0
  %v866 = vadd.f32 %v705, %v865
  %v867 = vpop.f32.mrb[0].mxu0
  %868 = vmatprep.mubr.f32.mxu0 0.0
  %869 = vmatmul.mubr.f32.gmra.mrb[0].mxu0 %v737
  %v870 = vpop.f32.mrb[0].mxu0
  %v871 = vadd.f32 %v705, %v870
  %v872 = vpop.f32.mrb[0].mxu0
  %873 = vmatprep.mubr.f32.mxu0 0.0
  %874 = vmatmul.mubr.f32.gmra.mrb[0].mxu0 %v740
  %v875 = vpop.f32.mrb[0].mxu0
  %v876 = vadd.f32 %v705, %v875
  %v877 = vpop.f32.mrb[0].mxu0
  %878 = vmatprep.mubr.f32.mxu0 0.0
  %879 = vmatmul.mubr.f32.gmra.mrb[0].mxu0 %v743
  %v880 = vpop.f32.mrb[0].mxu0
  %v881 = vadd.f32 %v705, %v880
  %v882 = vpop.f32.mrb[0].mxu0
  %883 = vmatprep.mubr.f32.mxu0 0.0
  %884 = vmatmul.mubr.f32.gmra.mrb[0].mxu0 %v746
  %v885 = vpop.f32.mrb[0].mxu0
  %v886 = vadd.f32 %v705, %v885
  %v887 = vpop.f32.mrb[0].mxu0
  %888 = vmatprep.mubr.f32.mxu0 0.0
  %889 = vmatmul.mubr.f32.gmra.mrb[0].mxu0 %v749
  %v890 = vpop.f32.mrb[0].mxu0
  %v891 = vadd.f32 %v705, %v890
  %v892 = vpop.f32.mrb[0].mxu0
  %893 = vmatprep.mubr.f32.mxu0 0.0
  %894 = vmatmul.mubr.f32.gmra.mrb[0].mxu0 %v752
  %v895 = vpop.f32.mrb[0].mxu0
  %v896 = vadd.f32 %v705, %v895
  %v897 = vpop.f32.mrb[0].mxu0
  %898 = vdwg.mxu0
  %v899 = vmax.f32 %v821, 0.0
  %v900 = vmax.f32 %v826, 0.0
  %v901 = vmax.f32 %v831, 0.0
  %v902 = vmax.f32 %v836, 0.0
  %v903 = vmax.f32 %v841, 0.0
  %v904 = vmax.f32 %v846, 0.0
  %v905 = vmax.f32 %v851, 0.0
  %v906 = vmax.f32 %v856, 0.0
  %v907 = vmax.f32 %v861, 0.0
  %v908 = vmax.f32 %v866, 0.0
  %v909 = vmax.f32 %v871, 0.0
  %v910 = vmax.f32 %v876, 0.0
  %v911 = vmax.f32 %v881, 0.0
  %v912 = vmax.f32 %v886, 0.0
  %v913 = vmax.f32 %v891, 0.0
  %v914 = vmax.f32 %v896, 0.0
  %v915 = vld [vmem:[%s4] sm:$0xff]
  %v916 = vld [vmem:[%s4 + $0x8] sm:$0xff]
  %v917 = vld [vmem:[%s4 + $0x10] sm:$0xff]
  %v918 = vld [vmem:[%s4 + $0x18] sm:$0xff]
  %v919 = vld [vmem:[%s5] sm:$0x1]
  %v921 = vlaneseq
  %v922 = vshrl.u32 %v921, 7
  %v923 = vsub.s32 0, %v922
  %v924 = vrot.slane %v919, %v923
  %v927 = vsel %vm269, %v899, 0
  %v930 = vsel %vm269, %v900, 0
  %v933 = vsel %vm269, %v901, 0
  %v936 = vsel %vm269, %v902, 0
  %v939 = vsel %vm269, %v903, 0
  %v942 = vsel %vm269, %v904, 0
  %v945 = vsel %vm269, %v905, 0
  %v948 = vsel %vm269, %v906, 0
  %v951 = vsel %vm269, %v907, 0
  %v954 = vsel %vm269, %v908, 0
  %v957 = vsel %vm269, %v909, 0
  %v960 = vsel %vm269, %v910, 0
  %v963 = vsel %vm269, %v911, 0
  %v966 = vsel %vm269, %v912, 0
  %v969 = vsel %vm269, %v913, 0
  %v972 = vsel %vm269, %v914, 0
  %974 = vmatprep.subr.mxu0 0.0
  %975 = vmatpush1.msra.mxu0 %v915
  %976 = vmatprep.subr.mxu0 0.0
  %977 = vmatpush1.msra.mxu0 %v916
  %978 = vmatprep.subr.mxu0 0.0
  %979 = vmatpush1.msra.mxu0 %v917
  %980 = vmatprep.subr.mxu0 0.0
  %981 = vmatpush1.msra.mxu0 %v918
  %982 = vmatprep.subr.mxu0 0.0
  %983 = vmatpush1.msra.mxu0 0.0
  %984 = vmatprep.subr.mxu0 0.0
  %985 = vmatpush1.msra.mxu0 0.0
  %986 = vmatprep.subr.mxu0 0.0
  %987 = vmatpush1.msra.mxu0 0.0
  %988 = vmatprep.subr.mxu0 0.0
  %989 = vmatpush1.msra.mxu0 0.0
  %990 = vmatprep.subr.mxu0 0.0
  %991 = vmatpush1.msra.mxu0 0.0
  %992 = vmatprep.subr.mxu0 0.0
  %993 = vmatpush1.msra.mxu0 0.0
  %994 = vmatprep.subr.mxu0 0.0
  %995 = vmatpush1.msra.mxu0 0.0
  %996 = vmatprep.subr.mxu0 0.0
  %997 = vmatpush1.msra.mxu0 0.0
  %998 = vmatprep.subr.mxu0 0.0
  %999 = vmatpush1.msra.mxu0 0.0
  %1000 = vmatprep.subr.mxu0 0.0
  %1001 = vmatpush1.msra.mxu0 0.0
  %1002 = vmatprep.subr.mxu0 0.0
  %1003 = vmatpush1.msra.mxu0 0.0
  %1004 = vmatprep.subr.mxu0 0.0
  %1005 = vmatpush1.msra.mxu0 0.0
  %1006 = vmatprep.subr.mxu0 0.0
  %1007 = vmatpush1.msra.mxu0 0.0
  %1008 = vmatprep.subr.mxu0 0.0
  %1009 = vmatpush1.msra.mxu0 0.0
  %1010 = vmatprep.subr.mxu0 0.0
  %1011 = vmatpush1.msra.mxu0 0.0
  %1012 = vmatprep.subr.mxu0 0.0
  %1013 = vmatpush1.msra.mxu0 0.0
  %1014 = vmatprep.subr.mxu0 0.0
  %1015 = vmatpush1.msra.mxu0 0.0
  %1016 = vmatprep.subr.mxu0 0.0
  %1017 = vmatpush1.msra.mxu0 0.0
  %1018 = vmatprep.subr.mxu0 0.0
  %1019 = vmatpush1.msra.mxu0 0.0
  %1020 = vmatprep.subr.mxu0 0.0
  %1021 = vmatpush1.msra.mxu0 0.0
  %1022 = vmatprep.subr.mxu0 0.0
  %1023 = vmatpush1.msra.mxu0 0.0
  %1024 = vmatprep.subr.mxu0 0.0
  %1025 = vmatpush1.msra.mxu0 0.0
  %1026 = vmatprep.subr.mxu0 0.0
  %1027 = vmatpush1.msra.mxu0 0.0
  %1028 = vmatprep.subr.mxu0 0.0
  %1029 = vmatpush1.msra.mxu0 0.0
  %1030 = vmatprep.subr.mxu0 0.0
  %1031 = vmatpush1.msra.mxu0 0.0
  %1032 = vmatprep.subr.mxu0 0.0
  %1033 = vmatpush1.msra.mxu0 0.0
  %1034 = vmatprep.subr.mxu0 0.0
  %1035 = vmatpush1.msra.mxu0 0.0
  %1036 = vmatprep.subr.mxu0 0.0
  %1037 = vmatpush1.msra.mxu0 0.0
  %1038 = vmatprep.mubr.f32.mxu0 0.0
  %1039 = vmatmul.mubr.f32.gmra.mrb[0].mxu0 %v927
  %v1040 = vpop.f32.mrb[0].mxu0
  %v1041 = vadd.f32 %v924, %v1040
  %v1042 = vpop.f32.mrb[0].mxu0
  %1043 = vmatprep.mubr.f32.mxu0 0.0
  %1044 = vmatmul.mubr.f32.gmra.mrb[0].mxu0 %v930
  %v1045 = vpop.f32.mrb[0].mxu0
  %v1046 = vadd.f32 %v924, %v1045
  %v1047 = vpop.f32.mrb[0].mxu0
  %1048 = vmatprep.mubr.f32.mxu0 0.0
  %1049 = vmatmul.mubr.f32.gmra.mrb[0].mxu0 %v933
  %v1050 = vpop.f32.mrb[0].mxu0
  %v1051 = vadd.f32 %v924, %v1050
  %v1052 = vpop.f32.mrb[0].mxu0
  %1053 = vmatprep.mubr.f32.mxu0 0.0
  %1054 = vmatmul.mubr.f32.gmra.mrb[0].mxu0 %v936
  %v1055 = vpop.f32.mrb[0].mxu0
  %v1056 = vadd.f32 %v924, %v1055
  %v1057 = vpop.f32.mrb[0].mxu0
  %1058 = vmatprep.mubr.f32.mxu0 0.0
  %1059 = vmatmul.mubr.f32.gmra.mrb[0].mxu0 %v939
  %v1060 = vpop.f32.mrb[0].mxu0
  %v1061 = vadd.f32 %v924, %v1060
  %v1062 = vpop.f32.mrb[0].mxu0
  %1063 = vmatprep.mubr.f32.mxu0 0.0
  %1064 = vmatmul.mubr.f32.gmra.mrb[0].mxu0 %v942
  %v1065 = vpop.f32.mrb[0].mxu0
  %v1066 = vadd.f32 %v924, %v1065
  %v1067 = vpop.f32.mrb[0].mxu0
  %1068 = vmatprep.mubr.f32.mxu0 0.0
  %1069 = vmatmul.mubr.f32.gmra.mrb[0].mxu0 %v945
  %v1070 = vpop.f32.mrb[0].mxu0
  %v1071 = vadd.f32 %v924, %v1070
  %v1072 = vpop.f32.mrb[0].mxu0
  %1073 = vmatprep.mubr.f32.mxu0 0.0
  %1074 = vmatmul.mubr.f32.gmra.mrb[0].mxu0 %v948
  %v1075 = vpop.f32.mrb[0].mxu0
  %v1076 = vadd.f32 %v924, %v1075
  %v1077 = vpop.f32.mrb[0].mxu0
  %1078 = vmatprep.mubr.f32.mxu0 0.0
  %1079 = vmatmul.mubr.f32.gmra.mrb[0].mxu0 %v951
  %v1080 = vpop.f32.mrb[0].mxu0
  %v1081 = vadd.f32 %v924, %v1080
  %v1082 = vpop.f32.mrb[0].mxu0
  %1083 = vmatprep.mubr.f32.mxu0 0.0
  %1084 = vmatmul.mubr.f32.gmra.mrb[0].mxu0 %v954
  %v1085 = vpop.f32.mrb[0].mxu0
  %v1086 = vadd.f32 %v924, %v1085
  %v1087 = vpop.f32.mrb[0].mxu0
  %1088 = vmatprep.mubr.f32.mxu0 0.0
  %1089 = vmatmul.mubr.f32.gmra.mrb[0].mxu0 %v957
  %v1090 = vpop.f32.mrb[0].mxu0
  %v1091 = vadd.f32 %v924, %v1090
  %v1092 = vpop.f32.mrb[0].mxu0
  %1093 = vmatprep.mubr.f32.mxu0 0.0
  %1094 = vmatmul.mubr.f32.gmra.mrb[0].mxu0 %v960
  %v1095 = vpop.f32.mrb[0].mxu0
  %v1096 = vadd.f32 %v924, %v1095
  %v1097 = vpop.f32.mrb[0].mxu0
  %1098 = vmatprep.mubr.f32.mxu0 0.0
  %1099 = vmatmul.mubr.f32.gmra.mrb[0].mxu0 %v963
  %v1100 = vpop.f32.mrb[0].mxu0
  %v1101 = vadd.f32 %v924, %v1100
  %v1102 = vpop.f32.mrb[0].mxu0
  %1103 = vmatprep.mubr.f32.mxu0 0.0
  %1104 = vmatmul.mubr.f32.gmra.mrb[0].mxu0 %v966
  %v1105 = vpop.f32.mrb[0].mxu0
  %v1106 = vadd.f32 %v924, %v1105
  %v1107 = vpop.f32.mrb[0].mxu0
  %1108 = vmatprep.mubr.f32.mxu0 0.0
  %1109 = vmatmul.mubr.f32.gmra.mrb[0].mxu0 %v969
  %v1110 = vpop.f32.mrb[0].mxu0
  %v1111 = vadd.f32 %v924, %v1110
  %v1112 = vpop.f32.mrb[0].mxu0
  %1113 = vmatprep.mubr.f32.mxu0 0.0
  %1114 = vmatmul.mubr.f32.gmra.mrb[0].mxu0 %v972
  %v1115 = vpop.f32.mrb[0].mxu0
  %v1116 = vadd.f32 %v924, %v1115
  %v1117 = vpop.f32.mrb[0].mxu0
  %1118 = vdwg.mxu0
  %v1119 = vtanh.pop %v1041
  %v1120 = vtanh.pop %v1046
  %v1121 = vtanh.pop %v1051
  %v1122 = vtanh.pop %v1056
  %v1123 = vtanh.pop %v1061
  %v1124 = vtanh.pop %v1066
  %v1125 = vtanh.pop %v1071
  %v1126 = vtanh.pop %v1076
  %v1127 = vtanh.pop %v1081
  %v1128 = vtanh.pop %v1086
  %v1129 = vtanh.pop %v1091
  %v1130 = vtanh.pop %v1096
  %v1131 = vtanh.pop %v1101
  %v1132 = vtanh.pop %v1106
  %v1133 = vtanh.pop %v1111
  %v1134 = vtanh.pop %v1116
  %1135 = vst.msk [vmem:[%s7] sm:$0xff] %vm269, %v899
  %1136 = vst.msk [vmem:[%s7 + $0x8] sm:$0xff] %vm269, %v900
  %1137 = vst.msk [vmem:[%s7 + $0x10] sm:$0xff] %vm269, %v901
  %1138 = vst.msk [vmem:[%s7 + $0x18] sm:$0xff] %vm269, %v902
  %1139 = vst.msk [vmem:[%s7 + $0x20] sm:$0xff] %vm269, %v903
  %1140 = vst.msk [vmem:[%s7 + $0x28] sm:$0xff] %vm269, %v904
  %1141 = vst.msk [vmem:[%s7 + $0x30] sm:$0xff] %vm269, %v905
  %1142 = vst.msk [vmem:[%s7 + $0x38] sm:$0xff] %vm269, %v906
  %1143 = vst.msk [vmem:[%s7 + $0x40] sm:$0xff] %vm269, %v907
  %1144 = vst.msk [vmem:[%s7 + $0x48] sm:$0xff] %vm269, %v908
  %1145 = vst.msk [vmem:[%s7 + $0x50] sm:$0xff] %vm269, %v909
  %1146 = vst.msk [vmem:[%s7 + $0x58] sm:$0xff] %vm269, %v910
  %1147 = vst.msk [vmem:[%s7 + $0x60] sm:$0xff] %vm269, %v911
  %1148 = vst.msk [vmem:[%s7 + $0x68] sm:$0xff] %vm269, %v912
  %1149 = vst.msk [vmem:[%s7 + $0x70] sm:$0xff] %vm269, %v913
  %1150 = vst.msk [vmem:[%s7 + $0x78] sm:$0xff] %vm269, %v914
  %v1151 = vld [vmem:[%s6] sm:$0xff]
  %vm1152 = vcmask 64512
  %v1154 = vsel %vm1152, %v1119, 0
  %v1157 = vsel %vm1152, %v1120, 0
  %v1160 = vsel %vm1152, %v1121, 0
  %v1163 = vsel %vm1152, %v1122, 0
  %v1166 = vsel %vm1152, %v1123, 0
  %v1169 = vsel %vm1152, %v1124, 0
  %v1172 = vsel %vm1152, %v1125, 0
  %v1175 = vsel %vm1152, %v1126, 0
  %v1178 = vsel %vm1152, %v1127, 0
  %v1181 = vsel %vm1152, %v1128, 0
  %v1184 = vsel %vm1152, %v1129, 0
  %v1187 = vsel %vm1152, %v1130, 0
  %v1190 = vsel %vm1152, %v1131, 0
  %v1193 = vsel %vm1152, %v1132, 0
  %v1196 = vsel %vm1152, %v1133, 0
  %v1199 = vsel %vm1152, %v1134, 0
  %1201 = vmatprep.subr.mxu0 0.0
  %1202 = vmatpush1.msra.mxu0 %v1151
  %1203 = vmatprep.subr.mxu0 0.0
  %1204 = vmatpush1.msra.mxu0 0.0
  %1205 = vmatprep.subr.mxu0 0.0
  %1206 = vmatpush1.msra.mxu0 0.0
  %1207 = vmatprep.subr.mxu0 0.0
  %1208 = vmatpush1.msra.mxu0 0.0
  %1209 = vmatprep.subr.mxu0 0.0
  %1210 = vmatpush1.msra.mxu0 0.0
  %1211 = vmatprep.subr.mxu0 0.0
  %1212 = vmatpush1.msra.mxu0 0.0
  %1213 = vmatprep.subr.mxu0 0.0
  %1214 = vmatpush1.msra.mxu0 0.0
  %1215 = vmatprep.subr.mxu0 0.0
  %1216 = vmatpush1.msra.mxu0 0.0
  %1217 = vmatprep.subr.mxu0 0.0
  %1218 = vmatpush1.msra.mxu0 0.0
  %1219 = vmatprep.subr.mxu0 0.0
  %1220 = vmatpush1.msra.mxu0 0.0
  %1221 = vmatprep.subr.mxu0 0.0
  %1222 = vmatpush1.msra.mxu0 0.0
  %1223 = vmatprep.subr.mxu0 0.0
  %1224 = vmatpush1.msra.mxu0 0.0
  %1225 = vmatprep.subr.mxu0 0.0
  %1226 = vmatpush1.msra.mxu0 0.0
  %1227 = vmatprep.subr.mxu0 0.0
  %1228 = vmatpush1.msra.mxu0 0.0
  %1229 = vmatprep.subr.mxu0 0.0
  %1230 = vmatpush1.msra.mxu0 0.0
  %1231 = vmatprep.subr.mxu0 0.0
  %1232 = vmatpush1.msra.mxu0 0.0
  %1233 = vmatprep.subr.mxu0 0.0
  %1234 = vmatpush1.msra.mxu0 0.0
  %1235 = vmatprep.subr.mxu0 0.0
  %1236 = vmatpush1.msra.mxu0 0.0
  %1237 = vmatprep.subr.mxu0 0.0
  %1238 = vmatpush1.msra.mxu0 0.0
  %1239 = vmatprep.subr.mxu0 0.0
  %1240 = vmatpush1.msra.mxu0 0.0
  %1241 = vmatprep.subr.mxu0 0.0
  %1242 = vmatpush1.msra.mxu0 0.0
  %1243 = vmatprep.subr.mxu0 0.0
  %1244 = vmatpush1.msra.mxu0 0.0
  %1245 = vmatprep.subr.mxu0 0.0
  %1246 = vmatpush1.msra.mxu0 0.0
  %1247 = vmatprep.subr.mxu0 0.0
  %1248 = vmatpush1.msra.mxu0 0.0
  %1249 = vmatprep.subr.mxu0 0.0
  %1250 = vmatpush1.msra.mxu0 0.0
  %1251 = vmatprep.subr.mxu0 0.0
  %1252 = vmatpush1.msra.mxu0 0.0
  %1253 = vmatprep.subr.mxu0 0.0
  %1254 = vmatpush1.msra.mxu0 0.0
  %1255 = vmatprep.subr.mxu0 0.0
  %1256 = vmatpush1.msra.mxu0 0.0
  %1257 = vmatprep.subr.mxu0 0.0
  %1258 = vmatpush1.msra.mxu0 0.0
  %1259 = vmatprep.subr.mxu0 0.0
  %1260 = vmatpush1.msra.mxu0 0.0
  %1261 = vmatprep.subr.mxu0 0.0
  %1262 = vmatpush1.msra.mxu0 0.0
  %1263 = vmatprep.subr.mxu0 0.0
  %1264 = vmatpush1.msra.mxu0 0.0
  %1265 = vmatprep.mubr.f32.mxu0 0.0
  %1266 = vmatmul.mubr.f32.gmra.mrb[0].mxu0 %v1154
  %v1267 = vpop.f32.mrb[0].mxu0
  %v1268 = vadd.f32 0.0, %v1267
  %v1269 = vpop.f32.mrb[0].mxu0
  %1270 = vmatprep.mubr.f32.mxu0 0.0
  %1271 = vmatmul.mubr.f32.gmra.mrb[0].mxu0 %v1157
  %v1272 = vpop.f32.mrb[0].mxu0
  %v1273 = vadd.f32 0.0, %v1272
  %v1274 = vpop.f32.mrb[0].mxu0
  %1275 = vmatprep.mubr.f32.mxu0 0.0
  %1276 = vmatmul.mubr.f32.gmra.mrb[0].mxu0 %v1160
  %v1277 = vpop.f32.mrb[0].mxu0
  %v1278 = vadd.f32 0.0, %v1277
  %v1279 = vpop.f32.mrb[0].mxu0
  %1280 = vmatprep.mubr.f32.mxu0 0.0
  %1281 = vmatmul.mubr.f32.gmra.mrb[0].mxu0 %v1163
  %v1282 = vpop.f32.mrb[0].mxu0
  %v1283 = vadd.f32 0.0, %v1282
  %v1284 = vpop.f32.mrb[0].mxu0
  %1285 = vmatprep.mubr.f32.mxu0 0.0
  %1286 = vmatmul.mubr.f32.gmra.mrb[0].mxu0 %v1166
  %v1287 = vpop.f32.mrb[0].mxu0
  %v1288 = vadd.f32 0.0, %v1287
  %v1289 = vpop.f32.mrb[0].mxu0
  %1290 = vmatprep.mubr.f32.mxu0 0.0
  %1291 = vmatmul.mubr.f32.gmra.mrb[0].mxu0 %v1169
  %v1292 = vpop.f32.mrb[0].mxu0
  %v1293 = vadd.f32 0.0, %v1292
  %v1294 = vpop.f32.mrb[0].mxu0
  %1295 = vmatprep.mubr.f32.mxu0 0.0
  %1296 = vmatmul.mubr.f32.gmra.mrb[0].mxu0 %v1172
  %v1297 = vpop.f32.mrb[0].mxu0
  %v1298 = vadd.f32 0.0, %v1297
  %v1299 = vpop.f32.mrb[0].mxu0
  %1300 = vmatprep.mubr.f32.mxu0 0.0
  %1301 = vmatmul.mubr.f32.gmra.mrb[0].mxu0 %v1175
  %v1302 = vpop.f32.mrb[0].mxu0
  %v1303 = vadd.f32 0.0, %v1302
  %v1304 = vpop.f32.mrb[0].mxu0
  %1305 = vmatprep.mubr.f32.mxu0 0.0
  %1306 = vmatmul.mubr.f32.gmra.mrb[0].mxu0 %v1178
  %v1307 = vpop.f32.mrb[0].mxu0
  %v1308 = vadd.f32 0.0, %v1307
  %v1309 = vpop.f32.mrb[0].mxu0
  %1310 = vmatprep.mubr.f32.mxu0 0.0
  %1311 = vmatmul.mubr.f32.gmra.mrb[0].mxu0 %v1181
  %v1312 = vpop.f32.mrb[0].mxu0
  %v1313 = vadd.f32 0.0, %v1312
  %v1314 = vpop.f32.mrb[0].mxu0
  %1315 = vmatprep.mubr.f32.mxu0 0.0
  %1316 = vmatmul.mubr.f32.gmra.mrb[0].mxu0 %v1184
  %v1317 = vpop.f32.mrb[0].mxu0
  %v1318 = vadd.f32 0.0, %v1317
  %v1319 = vpop.f32.mrb[0].mxu0
  %1320 = vmatprep.mubr.f32.mxu0 0.0
  %1321 = vmatmul.mubr.f32.gmra.mrb[0].mxu0 %v1187
  %v1322 = vpop.f32.mrb[0].mxu0
  %v1323 = vadd.f32 0.0, %v1322
  %v1324 = vpop.f32.mrb[0].mxu0
  %1325 = vmatprep.mubr.f32.mxu0 0.0
  %1326 = vmatmul.mubr.f32.gmra.mrb[0].mxu0 %v1190
  %v1327 = vpop.f32.mrb[0].mxu0
  %v1328 = vadd.f32 0.0, %v1327
  %v1329 = vpop.f32.mrb[0].mxu0
  %1330 = vmatprep.mubr.f32.mxu0 0.0
  %1331 = vmatmul.mubr.f32.gmra.mrb[0].mxu0 %v1193
  %v1332 = vpop.f32.mrb[0].mxu0
  %v1333 = vadd.f32 0.0, %v1332
  %v1334 = vpop.f32.mrb[0].mxu0
  %1335 = vmatprep.mubr.f32.mxu0 0.0
  %1336 = vmatmul.mubr.f32.gmra.mrb[0].mxu0 %v1196
  %v1337 = vpop.f32.mrb[0].mxu0
  %v1338 = vadd.f32 0.0, %v1337
  %v1339 = vpop.f32.mrb[0].mxu0
  %1340 = vmatprep.mubr.f32.mxu0 0.0
  %1341 = vmatmul.mubr.f32.gmra.mrb[0].mxu0 %v1199
  %v1342 = vpop.f32.mrb[0].mxu0
  %v1343 = vadd.f32 0.0, %v1342
  %v1344 = vpop.f32.mrb[0].mxu0
  %1345 = vdwg.mxu0
  %vm1346 = vcmask 31744
  %1347 = vst.msk [vmem:[%s8] sm:$0xff] %vm1346, %v1268
  %1348 = vst.msk [vmem:[%s8 + $0x8] sm:$0xff] %vm1346, %v1273
  %1349 = vst.msk [vmem:[%s8 + $0x10] sm:$0xff] %vm1346, %v1278
  %1350 = vst.msk [vmem:[%s8 + $0x18] sm:$0xff] %vm1346, %v1283
  %1351 = vst.msk [vmem:[%s8 + $0x20] sm:$0xff] %vm1346, %v1288
  %1352 = vst.msk [vmem:[%s8 + $0x28] sm:$0xff] %vm1346, %v1293
  %1353 = vst.msk [vmem:[%s8 + $0x30] sm:$0xff] %vm1346, %v1298
  %1354 = vst.msk [vmem:[%s8 + $0x38] sm:$0xff] %vm1346, %v1303
  %1355 = vst.msk [vmem:[%s8 + $0x40] sm:$0xff] %vm1346, %v1308
  %1356 = vst.msk [vmem:[%s8 + $0x48] sm:$0xff] %vm1346, %v1313
  %1357 = vst.msk [vmem:[%s8 + $0x50] sm:$0xff] %vm1346, %v1318
  %1358 = vst.msk [vmem:[%s8 + $0x58] sm:$0xff] %vm1346, %v1323
  %1359 = vst.msk [vmem:[%s8 + $0x60] sm:$0xff] %vm1346, %v1328
  %1360 = vst.msk [vmem:[%s8 + $0x68] sm:$0xff] %vm1346, %v1333
  %1361 = vst.msk [vmem:[%s8 + $0x70] sm:$0xff] %vm1346, %v1338
  %1362 = vst.msk [vmem:[%s8 + $0x78] sm:$0xff] %vm1346, %v1343
  // Predicated region
  $region30: #{tpu_custom_call.1} parent=0 // pred_check
    _
  $region31: #{tpu_custom_call.1} parent=0 // pred_check_branch
    %1364 = sbr.rel (0) target = $region33
  $region32: #{tpu_custom_call.1} parent=0 // pred_region
    _
  $region33: #{tpu_custom_call.1} parent=0 // pred_fallthru
    _
  // Predicated region
  $region34: #{tpu_custom_call.1} parent=0 // pred_check
    _
  $region35: #{tpu_custom_call.1} parent=0 // pred_check_branch
    %1366 = sbr.rel (0) target = $region37
  $region36: #{tpu_custom_call.1} parent=0 // pred_region
    _
  $region37: #{tpu_custom_call.1} parent=0 // pred_fallthru
    _
  // Predicated region
  $region38: #{tpu_custom_call.1} parent=0 // pred_check
    _
  $region39: #{tpu_custom_call.1} parent=0 // pred_check_branch
    %1368 = sbr.rel (0) target = $region41
  $region40: #{tpu_custom_call.1} parent=0 // pred_region
    _
  $region41: #{tpu_custom_call.1} parent=0 // pred_fallthru
    _
  // Predicated region
  $region42: #{tpu_custom_call.1} parent=0 // pred_check
    _
  $region43: #{tpu_custom_call.1} parent=0 // pred_check_branch
    %1370 = sbr.rel (0) target = $region45
  $region44: #{tpu_custom_call.1} parent=0 // pred_region
    _
  $region45: #{tpu_custom_call.1} parent=0 // pred_fallthru
    _

</llo_original>
